<compile_context>
chip_gen: v6e
topology: v6e:2x2x1
jax: 0.10.0
libtpu: 0.0.40
codegen_flags: <defaults>
</compile_context>

<pallas_src>
import jax
import jax.numpy as jnp
from jax.experimental import pallas as pl
from jax.experimental.pallas import tpu as pltpu


def _round_up(x, m):
    return ((x + m - 1) // m) * m


def _pad_axis(x, axis, new_size, value=0.0):
    pad = new_size - x.shape[axis]
    if pad <= 0:
        return x
    widths = [(0, 0)] * x.ndim
    widths[axis] = (0, pad)
    return jnp.pad(x, widths, constant_values=value)


def _make_decoder_kernel(head_num, qkv_dim, sqrt_qkv_dim,
                         sqrt_embedding_dim, logit_clipping):
    H = int(head_num)
    D = int(qkv_dim)
    inv_sqrt_d = 1.0 / float(sqrt_qkv_dim)
    inv_sqrt_e = 1.0 / float(sqrt_embedding_dim)
    clip = float(logit_clipping)

    def kernel(eq0_ref, q1_ref, k_ref, v_ref, ejobs_ref, mask_ref,
               wq0_ref, wc_ref, bc_ref, probs_ref):
        Bt, n, E = eq0_ref.shape
        HD = q1_ref.shape[-1]

        eq0 = eq0_ref[...].astype(jnp.float32)           # (Bt, n, E)
        q1 = q1_ref[...].astype(jnp.float32)             # (Bt, n, HD)
        mask = mask_ref[...].astype(jnp.float32)         # (Bt, n, Np)
        wq0 = wq0_ref[...].astype(jnp.float32)           # (E, HD)
        wc = wc_ref[...].astype(jnp.float32)             # (HD, E)
        bc = bc_ref[...].astype(jnp.float32)             # (1, E)

        # Wq_0 projection folded over (Bt, n); q = (q1 + q0) / sqrt(D) done
        # once, lane-dense across all heads.
        q0_2d = jnp.dot(eq0.reshape(Bt * n, E), wq0,
                        preferred_element_type=jnp.float32)         # (Bt*n, HD)
        q = ((q1.reshape(Bt * n, HD) + q0_2d) * inv_sqrt_d).reshape(Bt, n, HD)

        # Per-head attention with deferred softmax normalization.  Only the
        # small (Bt, n, D) per-head output is carried out of each iteration;
        # the (Bt, n, Np) score/exp tensors die inside it.  k/v per-head
        # slices are loaded from the VMEM refs inside the loop.
        outs = []
        for h in range(H):
            lo = h * D
            qh = q[:, :, lo:lo + D]                                  # (Bt, n, D)
            kh = k_ref[:, :, lo:lo + D].astype(jnp.float32)          # (Bt, Np, D)
            vh = v_ref[:, :, lo:lo + D].astype(jnp.float32)          # (Bt, Np, D)

            s = jnp.einsum('bnd,bmd->bnm', qh, kh,
                           preferred_element_type=jnp.float32)       # (Bt, n, Np)
            s = s + mask
            p = jnp.exp(s - jnp.max(s, axis=-1, keepdims=True))
            denom = jnp.sum(p, axis=-1, keepdims=True)               # (Bt, n, 1)
            o = jnp.einsum('bnm,bmd->bnd', p, vh,
                           preferred_element_type=jnp.float32)       # (Bt, n, D)
            # Normalize the D-wide output instead of the Np-wide weights.
            # (approx=True would route to the EUP but loosens accuracy.)
            o = o * pl.reciprocal(denom, approx=False)
            outs.append(o)

        # multi_head_combine as ONE K = H*D MXU matmul (not H tiny K=D passes).
        o_concat = jnp.concatenate(outs, axis=-1).reshape(Bt * n, HD)
        mh = (jnp.dot(o_concat, wc, preferred_element_type=jnp.float32)
              + bc).reshape(Bt, n, E)

        # Single-head score against encoded_jobs (== mh @ single_head_key).
        ejobs = ejobs_ref[...].astype(jnp.float32)                   # (Bt, Np, E)
        score = jnp.einsum('bne,bme->bnm', mh, ejobs,
                           preferred_element_type=jnp.float32)       # (Bt, n, Np)
        score = clip * jnp.tanh(score * inv_sqrt_e) + mask
        p = jnp.exp(score - jnp.max(score, axis=-1, keepdims=True))
        probs = p * pl.reciprocal(jnp.sum(p, axis=-1, keepdims=True),
                                  approx=False)

        probs_ref[...] = probs.astype(probs_ref.dtype)

    return kernel


def _vmem_budget():
    """Generation-aware VMEM budget: ~3/4 of physical VMEM (96 MiB on
    v5e/v6e, 48 MiB on v7x), minus headroom for compute intermediates."""
    try:
        cap = int(getattr(pltpu.get_tpu_info(), "vmem_capacity_bytes",
                          64 * 1024 * 1024))
    except Exception:
        cap = 64 * 1024 * 1024
    vmem_limit = min(int(cap * 3 // 4), 96 * 1024 * 1024)
    block_budget = max(vmem_limit - 8 * 1024 * 1024, 16 * 1024 * 1024)
    return vmem_limit, block_budget


def _pick_batch_tile(B, n_pad, N_pad, HD, E, block_budget_bytes, itemsize=4):
    """Largest batch tile whose (8,128)-padded, double-buffered blocks plus an
    estimate of in-kernel f32 intermediates fit the VMEM budget.  Prefers an
    even number of >= 2 grid steps (v7x megacore)."""
    r8 = lambda x: _round_up(x, 8)
    r128 = lambda x: _round_up(x, 128)
    blocks_per_b = (r8(n_pad) * r128(E)              # encoded_q0
                    + r8(n_pad) * r128(HD)           # q1 (fused heads)
                    + 2 * r8(N_pad) * r128(HD)       # k, v (fused heads)
                    + r8(N_pad) * r128(E)            # encoded_jobs
                    + 2 * r8(n_pad) * r128(N_pad)    # mask + probs out
                    ) * itemsize
    interm_per_b = n_pad * (2 * HD + E + 3 * N_pad) * itemsize
    weights = 2 * (r8(E) * r128(HD) + r8(HD) * r128(E) + 8 * r128(E)) * itemsize
    per_b = 2 * blocks_per_b + interm_per_b          # double-buffered blocks
    avail = max(block_budget_bytes - weights, per_b)
    bt_max = max(1, min(B, avail // per_b))
    if B >= 2:
        bt_max = min(bt_max, max(1, B // 2))         # keep >= 2 grid steps
    first_div = 1
    found = False
    for bt in range(bt_max, 0, -1):
        if B % bt == 0:
            if not found:
                first_div, found = bt, True
            if (B // bt) % 2 == 0:
                return bt                            # even step count
    return first_div


def atsp_decoder_forward(encoded_q0, ninf_mask, q1_flat, k_flat, v_flat,
                         encoded_jobs, Wq0, Wcomb, bcomb, *, head_num, qkv_dim,
                         sqrt_qkv_dim, sqrt_embedding_dim, logit_clipping,
                         batch_tile=None):
    """Fused ATSP decoder forward (single pallas_call).

    encoded_q0  : (B, n, E)           ninf_mask : (B, n, N)
    q1_flat     : (B, n, H*D) = Wq_1(encoded_q1)  (fused-head layout)
    k_flat      : (B, N, H*D) = Wk(encoded_jobs)
    v_flat      : (B, N, H*D) = Wv(encoded_jobs)
    encoded_jobs: (B, N, E)   (single_head_key = encoded_jobs^T)
    Wq0: (H*D, E)  Wcomb: (E, H*D)  bcomb: (E,)   (PyTorch nn.Linear layout)
    Returns probs : (B, n, N)
    """
    B, n, E = encoded_q0.shape
    H, D = int(head_num), int(qkv_dim)
    HD = H * D
    N = encoded_jobs.shape[1]

    n_pad = _round_up(n, 8)
    N_pad = _round_up(N, 128)      # lane-dense score / probs tiles + stores

    f32 = jnp.float32
    eq0_p = _pad_axis(jnp.asarray(encoded_q0, f32), 1, n_pad)
    q1_p = _pad_axis(jnp.asarray(q1_flat, f32), 1, n_pad)
    k_p = _pad_axis(jnp.asarray(k_flat, f32), 1, N_pad)
    v_p = _pad_axis(jnp.asarray(v_flat, f32), 1, N_pad)
    ejobs_p = _pad_axis(jnp.asarray(encoded_jobs, f32), 1, N_pad)
    # Padded job columns get -inf (softmax -> exactly 0); padded query rows
    # stay unmasked (finite garbage, sliced off below; avoids 0/0 NaN rows).
    mask_p = _pad_axis(jnp.asarray(ninf_mask, f32), 2, N_pad, value=-jnp.inf)
    mask_p = _pad_axis(mask_p, 1, n_pad, value=0.0)

    wq0_t = jnp.asarray(Wq0, f32).T                 # (E, HD)
    wc_t = jnp.asarray(Wcomb, f32).T                # (HD, E)
    bc2 = jnp.asarray(bcomb, f32).reshape(1, E)

    vmem_limit, block_budget = _vmem_budget()
    Bt = batch_tile if batch_tile is not None else _pick_batch_tile(
        B, n_pad, N_pad, HD, E, block_budget)
    grid = (B // Bt,)

    kernel = _make_decoder_kernel(head_num, qkv_dim, sqrt_qkv_dim,
                                  sqrt_embedding_dim, logit_clipping)

    grid_spec = pltpu.PrefetchScalarGridSpec(
        num_scalar_prefetch=0,
        grid=grid,
        in_specs=[
            pl.BlockSpec((Bt, n_pad, E), lambda b: (b, 0, 0)),      # encoded_q0
            pl.BlockSpec((Bt, n_pad, HD), lambda b: (b, 0, 0)),     # q1 fused
            pl.BlockSpec((Bt, N_pad, HD), lambda b: (b, 0, 0)),     # k fused
            pl.BlockSpec((Bt, N_pad, HD), lambda b: (b, 0, 0)),     # v fused
            pl.BlockSpec((Bt, N_pad, E), lambda b: (b, 0, 0)),      # encoded_jobs
            pl.BlockSpec((Bt, n_pad, N_pad), lambda b: (b, 0, 0)),  # ninf_mask
            pl.BlockSpec((E, HD), lambda b: (0, 0)),                # Wq_0^T
            pl.BlockSpec((HD, E), lambda b: (0, 0)),                # Wcomb^T
            pl.BlockSpec((1, E), lambda b: (0, 0)),                 # combine bias
        ],
        out_specs=pl.BlockSpec((Bt, n_pad, N_pad), lambda b: (b, 0, 0)),
    )

    probs_padded = pl.pallas_call(
        kernel,
        out_shape=jax.ShapeDtypeStruct((B, n_pad, N_pad), encoded_q0.dtype),
        grid_spec=grid_spec,
        compiler_params=pltpu.CompilerParams(
            dimension_semantics=("parallel",),
            vmem_limit_bytes=vmem_limit,
        ),
    )(eq0_p, q1_p, k_p, v_p, ejobs_p, mask_p, wq0_t, wc_t, bc2)

    return probs_padded[:, :n, :N]


# ----------------------------- reference path ------------------------------

def _reshape_by_heads(x, head_num):
    B, n, _ = x.shape
    return x.reshape(B, n, head_num, -1).transpose(0, 2, 1, 3)


def _reference_forward(encoded_q0, ninf_mask, q1_flat, k_flat, v_flat,
                       encoded_jobs, Wq0, Wcomb, bcomb, *, head_num,
                       sqrt_qkv_dim, sqrt_embedding_dim, logit_clipping):
    q0 = _reshape_by_heads(encoded_q0 @ Wq0.T, head_num)
    q1 = _reshape_by_heads(q1_flat, head_num)
    k = _reshape_by_heads(k_flat, head_num)
    v = _reshape_by_heads(v_flat, head_num)
    q = q1 + q0
    score = jnp.einsum('bhnd,bhmd->bhnm', q, k) / sqrt_qkv_dim
    score = score + ninf_mask[:, None, :, :]
    weights = jax.nn.softmax(score, axis=3)
    out = jnp.einsum('bhnm,bhmd->bhnd', weights, v)
    B, H, n, D = out.shape
    out_concat = out.transpose(0, 2, 1, 3).reshape(B, n, H * D)
    mh = out_concat @ Wcomb.T + bcomb
    single_head_key = encoded_jobs.transpose(0, 2, 1)
    s = jnp.einsum('bne,bem->bnm', mh, single_head_key)
    s = logit_clipping * jnp.tanh(s / sqrt_embedding_dim) + ninf_mask
    return jax.nn.softmax(s, axis=2)


if __name__ == "__main__":
    # Small model params consistent with MatNet's ATSP decoder.
    embedding_dim = 32
    head_num = 4
    qkv_dim = 8
    sqrt_embedding_dim = embedding_dim ** 0.5
    sqrt_qkv_dim = qkv_dim ** 0.5
    logit_clipping = 10.0

    B, n, N = 2, 8, 16          # batch, query (pomo) count, node/job count
    HD = head_num * qkv_dim

    key = jax.random.PRNGKey(0)
    keys = jax.random.split(key, 10)

    encoded_jobs = jax.random.normal(keys[0], (B, N, embedding_dim), jnp.float32)
    encoded_q1 = jax.random.normal(keys[1], (B, n, embedding_dim), jnp.float32)
    encoded_q0 = jax.random.normal(keys[2], (B, n, embedding_dim), jnp.float32)

    # rank-3 -inf mask; keep column 0 unmasked so every softmax row is valid.
    u = jax.random.uniform(keys[3], (B, n, N))
    ninf_mask = jnp.where(u < 0.2, -jnp.inf, 0.0).astype(jnp.float32)
    ninf_mask = ninf_mask.at[:, :, 0].set(0.0)

    # Parameters (PyTorch nn.Linear layout: weight is (out, in)).
    Wq0 = 0.1 * jax.random.normal(keys[4], (HD, embedding_dim), jnp.float32)
    Wq1 = 0.1 * jax.random.normal(keys[5], (HD, embedding_dim), jnp.float32)
    Wk = 0.1 * jax.random.normal(keys[6], (HD, embedding_dim), jnp.float32)
    Wv = 0.1 * jax.random.normal(keys[7], (HD, embedding_dim), jnp.float32)
    Wcomb = 0.1 * jax.random.normal(keys[8], (embedding_dim, HD), jnp.float32)
    bcomb = 0.1 * jax.random.normal(keys[9], (embedding_dim,), jnp.float32)

    # set_kv / set_q1 decoder state, kept in the fused lane-dense (B,seq,H*D)
    # layout (mathematically identical to reshape_by_heads(...) state).
    k_flat = encoded_jobs @ Wk.T          # (B, N, H*D)
    v_flat = encoded_jobs @ Wv.T          # (B, N, H*D)
    q1_flat = encoded_q1 @ Wq1.T          # (B, n, H*D)

    probs = atsp_decoder_forward(
        encoded_q0, ninf_mask, q1_flat, k_flat, v_flat, encoded_jobs,
        Wq0, Wcomb, bcomb,
        head_num=head_num, qkv_dim=qkv_dim,
        sqrt_qkv_dim=sqrt_qkv_dim,
        sqrt_embedding_dim=sqrt_embedding_dim,
        logit_clipping=logit_clipping,
    )
    probs = jax.block_until_ready(probs)

    ref = _reference_forward(
        encoded_q0, ninf_mask, q1_flat, k_flat, v_flat, encoded_jobs,
        Wq0, Wcomb, bcomb,
        head_num=head_num,
        sqrt_qkv_dim=sqrt_qkv_dim,
        sqrt_embedding_dim=sqrt_embedding_dim,
        logit_clipping=logit_clipping,
    )

    assert probs.shape == (B, n, N), "wrong output shape"
    assert not bool(jnp.any(jnp.isnan(probs))), "NaN in kernel output"
    assert jnp.allclose(probs, ref, atol=2e-4, rtol=2e-4), "mismatch vs reference"
    assert jnp.allclose(jnp.sum(probs, axis=-1), 1.0, atol=1e-4), "rows must sum to 1"

    print("KERNEL_OK")
</pallas_src>

<mosaic_0001>
module attributes {stable_mosaic.version = 11 : i64} {
  func.func @kernel(%arg0: i32, %arg1: memref<1x8x32xf32, #tpu.memory_space<vmem>>, %arg2: memref<1x8x32xf32, #tpu.memory_space<vmem>>, %arg3: memref<1x128x32xf32, #tpu.memory_space<vmem>>, %arg4: memref<1x128x32xf32, #tpu.memory_space<vmem>>, %arg5: memref<1x128x32xf32, #tpu.memory_space<vmem>>, %arg6: memref<1x8x128xf32, #tpu.memory_space<vmem>>, %arg7: memref<32x32xf32, #tpu.memory_space<vmem>>, %arg8: memref<32x32xf32, #tpu.memory_space<vmem>>, %arg9: memref<1x32xf32, #tpu.memory_space<vmem>>, %arg10: memref<1x8x128xf32, #tpu.memory_space<vmem>>) attributes {dimension_semantics = [#tpu.dimension_semantics<parallel>], iteration_bounds = array<i64: 2>, scalar_prefetch = 0 : i64, scratch_operands = 0 : i64, tpu.core_type = #tpu.core_type<tc>, window_params = [{transform_indices = @transform_0, window_bounds = array<i64: 1, 8, 32>}, {transform_indices = @transform_1, window_bounds = array<i64: 1, 8, 32>}, {transform_indices = @transform_2, window_bounds = array<i64: 1, 128, 32>}, {transform_indices = @transform_3, window_bounds = array<i64: 1, 128, 32>}, {transform_indices = @transform_4, window_bounds = array<i64: 1, 128, 32>}, {transform_indices = @transform_5, window_bounds = array<i64: 1, 8, 128>}, {pipeline_mode = #tpu.pipeline_mode<synchronous>, transform_indices = @transform_6, window_bounds = array<i64: 32, 32>}, {pipeline_mode = #tpu.pipeline_mode<synchronous>, transform_indices = @transform_7, window_bounds = array<i64: 32, 32>}, {pipeline_mode = #tpu.pipeline_mode<synchronous>, transform_indices = @transform_8, window_bounds = array<i64: 1, 32>}, {transform_indices = @transform_9, window_bounds = array<i64: 1, 8, 128>}]} {
    %c0 = arith.constant 0 : index
    %c0_0 = arith.constant 0 : index
    %c0_1 = arith.constant 0 : index
    %0 = vector.load %arg1[%c0, %c0_0, %c0_1] : memref<1x8x32xf32, #tpu.memory_space<vmem>>, vector<1x8x32xf32>
    %c0_2 = arith.constant 0 : index
    %c0_3 = arith.constant 0 : index
    %c0_4 = arith.constant 0 : index
    %1 = vector.load %arg2[%c0_2, %c0_3, %c0_4] : memref<1x8x32xf32, #tpu.memory_space<vmem>>, vector<1x8x32xf32>
    %c0_5 = arith.constant 0 : index
    %c0_6 = arith.constant 0 : index
    %c0_7 = arith.constant 0 : index
    %2 = vector.load %arg6[%c0_5, %c0_6, %c0_7] : memref<1x8x128xf32, #tpu.memory_space<vmem>>, vector<1x8x128xf32>
    %c0_8 = arith.constant 0 : index
    %c0_9 = arith.constant 0 : index
    %3 = vector.load %arg7[%c0_8, %c0_9] : memref<32x32xf32, #tpu.memory_space<vmem>>, vector<32x32xf32>
    %c0_10 = arith.constant 0 : index
    %c0_11 = arith.constant 0 : index
    %4 = vector.load %arg8[%c0_10, %c0_11] : memref<32x32xf32, #tpu.memory_space<vmem>>, vector<32x32xf32>
    %c0_12 = arith.constant 0 : index
    %c0_13 = arith.constant 0 : index
    %5 = vector.load %arg9[%c0_12, %c0_13] : memref<1x32xf32, #tpu.memory_space<vmem>>, vector<1x32xf32>
    %6 = vector.shape_cast %0 : vector<1x8x32xf32> to vector<8x32xf32>
    %cst = arith.constant dense<0.000000e+00> : vector<8x32xf32>
    %7 = tpu.matmul %6, %3, %cst {dimension_numbers = #tpu.dot_dimension_numbers<[1], [0], [0], [1], [0, 0, 1, 1], [], []>} : vector<8x32xf32>, vector<32x32xf32>, vector<8x32xf32> -> vector<8x32xf32>
    %8 = vector.shape_cast %1 : vector<1x8x32xf32> to vector<8x32xf32>
    %9 = arith.addf %8, %7 : vector<8x32xf32>
    %cst_14 = arith.constant 0.353553385 : f32
    %10 = vector.broadcast %cst_14 : f32 to vector<8x32xf32>
    %11 = arith.mulf %9, %10 : vector<8x32xf32>
    %12 = vector.shape_cast %11 : vector<8x32xf32> to vector<1x8x32xf32>
    %13 = vector.extract_strided_slice %12 {offsets = [0, 0, 0], sizes = [1, 8, 8], strides = [1, 1, 1]} : vector<1x8x32xf32> to vector<1x8x8xf32>
    %c0_15 = arith.constant 0 : index
    %c0_16 = arith.constant 0 : index
    %c0_17 = arith.constant 0 : index
    %14 = vector.load %arg3[%c0_15, %c0_16, %c0_17] : memref<1x128x32xf32, #tpu.memory_space<vmem>>, vector<1x128x8xf32>
    %c0_18 = arith.constant 0 : index
    %c0_19 = arith.constant 0 : index
    %c0_20 = arith.constant 0 : index
    %15 = vector.load %arg4[%c0_18, %c0_19, %c0_20] : memref<1x128x32xf32, #tpu.memory_space<vmem>>, vector<1x128x8xf32>
    "tpu.trace_start"() <{level = 10 : i32, message = "bnd,bmd->bnm"}> : () -> ()
    %cst_21 = arith.constant dense<0.000000e+00> : vector<1x8x128xf32>
    %16 = tpu.matmul %13, %14, %cst_21 {dimension_numbers = #tpu.dot_dimension_numbers<[2], [2], [1], [1], [0, 0, 0, 1, 1, 1], [0], [0]>} : vector<1x8x8xf32>, vector<1x128x8xf32>, vector<1x8x128xf32> -> vector<1x8x128xf32>
    "tpu.trace_stop"() : () -> ()
    %17 = arith.addf %16, %2 : vector<1x8x128xf32>
    %cst_22 = arith.constant dense<0xFF800000> : vector<1x8xf32>
    %18 = vector.multi_reduction <maximumf>, %17, %cst_22 [2] : vector<1x8x128xf32> to vector<1x8xf32>
    %19 = vector.shape_cast %18 : vector<1x8xf32> to vector<1x8x1xf32>
    %20 = vector.broadcast %19 : vector<1x8x1xf32> to vector<1x8x128xf32>
    %21 = arith.subf %17, %20 : vector<1x8x128xf32>
    %22 = math.exp %21 : vector<1x8x128xf32>
    %cst_23 = arith.constant dense<0.000000e+00> : vector<1x8xf32>
    %23 = vector.multi_reduction <add>, %22, %cst_23 [2] : vector<1x8x128xf32> to vector<1x8xf32>
    %24 = vector.shape_cast %23 : vector<1x8xf32> to vector<1x8x1xf32>
    "tpu.trace_start"() <{level = 10 : i32, message = "bnm,bmd->bnd"}> : () -> ()
    %cst_24 = arith.constant dense<0.000000e+00> : vector<1x8x8xf32>
    %25 = tpu.matmul %22, %15, %cst_24 {dimension_numbers = #tpu.dot_dimension_numbers<[2], [1], [1], [2], [0, 0, 0, 1, 1, 2], [0], [0]>} : vector<1x8x128xf32>, vector<1x128x8xf32>, vector<1x8x8xf32> -> vector<1x8x8xf32>
    "tpu.trace_stop"() : () -> ()
    %26 = tpu.reciprocal %24 : vector<1x8x1xf32> -> vector<1x8x1xf32>
    %27 = vector.broadcast %26 : vector<1x8x1xf32> to vector<1x8x8xf32>
    %28 = arith.mulf %25, %27 : vector<1x8x8xf32>
    %29 = vector.extract_strided_slice %12 {offsets = [0, 0, 8], sizes = [1, 8, 8], strides = [1, 1, 1]} : vector<1x8x32xf32> to vector<1x8x8xf32>
    %c0_25 = arith.constant 0 : index
    %c0_26 = arith.constant 0 : index
    %c8 = arith.constant 8 : index
    %30 = vector.load %arg3[%c0_25, %c0_26, %c8] : memref<1x128x32xf32, #tpu.memory_space<vmem>>, vector<1x128x8xf32>
    %c0_27 = arith.constant 0 : index
    %c0_28 = arith.constant 0 : index
    %c8_29 = arith.constant 8 : index
    %31 = vector.load %arg4[%c0_27, %c0_28, %c8_29] : memref<1x128x32xf32, #tpu.memory_space<vmem>>, vector<1x128x8xf32>
    "tpu.trace_start"() <{level = 10 : i32, message = "bnd,bmd->bnm"}> : () -> ()
    %cst_30 = arith.constant dense<0.000000e+00> : vector<1x8x128xf32>
    %32 = tpu.matmul %29, %30, %cst_30 {dimension_numbers = #tpu.dot_dimension_numbers<[2], [2], [1], [1], [0, 0, 0, 1, 1, 1], [0], [0]>} : vector<1x8x8xf32>, vector<1x128x8xf32>, vector<1x8x128xf32> -> vector<1x8x128xf32>
    "tpu.trace_stop"() : () -> ()
    %33 = arith.addf %32, %2 : vector<1x8x128xf32>
    %cst_31 = arith.constant dense<0xFF800000> : vector<1x8xf32>
    %34 = vector.multi_reduction <maximumf>, %33, %cst_31 [2] : vector<1x8x128xf32> to vector<1x8xf32>
    %35 = vector.shape_cast %34 : vector<1x8xf32> to vector<1x8x1xf32>
    %36 = vector.broadcast %35 : vector<1x8x1xf32> to vector<1x8x128xf32>
    %37 = arith.subf %33, %36 : vector<1x8x128xf32>
    %38 = math.exp %37 : vector<1x8x128xf32>
    %cst_32 = arith.constant dense<0.000000e+00> : vector<1x8xf32>
    %39 = vector.multi_reduction <add>, %38, %cst_32 [2] : vector<1x8x128xf32> to vector<1x8xf32>
    %40 = vector.shape_cast %39 : vector<1x8xf32> to vector<1x8x1xf32>
    "tpu.trace_start"() <{level = 10 : i32, message = "bnm,bmd->bnd"}> : () -> ()
    %cst_33 = arith.constant dense<0.000000e+00> : vector<1x8x8xf32>
    %41 = tpu.matmul %38, %31, %cst_33 {dimension_numbers = #tpu.dot_dimension_numbers<[2], [1], [1], [2], [0, 0, 0, 1, 1, 2], [0], [0]>} : vector<1x8x128xf32>, vector<1x128x8xf32>, vector<1x8x8xf32> -> vector<1x8x8xf32>
    "tpu.trace_stop"() : () -> ()
    %42 = tpu.reciprocal %40 : vector<1x8x1xf32> -> vector<1x8x1xf32>
    %43 = vector.broadcast %42 : vector<1x8x1xf32> to vector<1x8x8xf32>
    %44 = arith.mulf %41, %43 : vector<1x8x8xf32>
    %45 = vector.extract_strided_slice %12 {offsets = [0, 0, 16], sizes = [1, 8, 8], strides = [1, 1, 1]} : vector<1x8x32xf32> to vector<1x8x8xf32>
    %c0_34 = arith.constant 0 : index
    %c0_35 = arith.constant 0 : index
    %c16 = arith.constant 16 : index
    %46 = vector.load %arg3[%c0_34, %c0_35, %c16] : memref<1x128x32xf32, #tpu.memory_space<vmem>>, vector<1x128x8xf32>
    %c0_36 = arith.constant 0 : index
    %c0_37 = arith.constant 0 : index
    %c16_38 = arith.constant 16 : index
    %47 = vector.load %arg4[%c0_36, %c0_37, %c16_38] : memref<1x128x32xf32, #tpu.memory_space<vmem>>, vector<1x128x8xf32>
    "tpu.trace_start"() <{level = 10 : i32, message = "bnd,bmd->bnm"}> : () -> ()
    %cst_39 = arith.constant dense<0.000000e+00> : vector<1x8x128xf32>
    %48 = tpu.matmul %45, %46, %cst_39 {dimension_numbers = #tpu.dot_dimension_numbers<[2], [2], [1], [1], [0, 0, 0, 1, 1, 1], [0], [0]>} : vector<1x8x8xf32>, vector<1x128x8xf32>, vector<1x8x128xf32> -> vector<1x8x128xf32>
    "tpu.trace_stop"() : () -> ()
    %49 = arith.addf %48, %2 : vector<1x8x128xf32>
    %cst_40 = arith.constant dense<0xFF800000> : vector<1x8xf32>
    %50 = vector.multi_reduction <maximumf>, %49, %cst_40 [2] : vector<1x8x128xf32> to vector<1x8xf32>
    %51 = vector.shape_cast %50 : vector<1x8xf32> to vector<1x8x1xf32>
    %52 = vector.broadcast %51 : vector<1x8x1xf32> to vector<1x8x128xf32>
    %53 = arith.subf %49, %52 : vector<1x8x128xf32>
    %54 = math.exp %53 : vector<1x8x128xf32>
    %cst_41 = arith.constant dense<0.000000e+00> : vector<1x8xf32>
    %55 = vector.multi_reduction <add>, %54, %cst_41 [2] : vector<1x8x128xf32> to vector<1x8xf32>
    %56 = vector.shape_cast %55 : vector<1x8xf32> to vector<1x8x1xf32>
    "tpu.trace_start"() <{level = 10 : i32, message = "bnm,bmd->bnd"}> : () -> ()
    %cst_42 = arith.constant dense<0.000000e+00> : vector<1x8x8xf32>
    %57 = tpu.matmul %54, %47, %cst_42 {dimension_numbers = #tpu.dot_dimension_numbers<[2], [1], [1], [2], [0, 0, 0, 1, 1, 2], [0], [0]>} : vector<1x8x128xf32>, vector<1x128x8xf32>, vector<1x8x8xf32> -> vector<1x8x8xf32>
    "tpu.trace_stop"() : () -> ()
    %58 = tpu.reciprocal %56 : vector<1x8x1xf32> -> vector<1x8x1xf32>
    %59 = vector.broadcast %58 : vector<1x8x1xf32> to vector<1x8x8xf32>
    %60 = arith.mulf %57, %59 : vector<1x8x8xf32>
    %61 = vector.extract_strided_slice %12 {offsets = [0, 0, 24], sizes = [1, 8, 8], strides = [1, 1, 1]} : vector<1x8x32xf32> to vector<1x8x8xf32>
    %c0_43 = arith.constant 0 : index
    %c0_44 = arith.constant 0 : index
    %c24 = arith.constant 24 : index
    %62 = vector.load %arg3[%c0_43, %c0_44, %c24] : memref<1x128x32xf32, #tpu.memory_space<vmem>>, vector<1x128x8xf32>
    %c0_45 = arith.constant 0 : index
    %c0_46 = arith.constant 0 : index
    %c24_47 = arith.constant 24 : index
    %63 = vector.load %arg4[%c0_45, %c0_46, %c24_47] : memref<1x128x32xf32, #tpu.memory_space<vmem>>, vector<1x128x8xf32>
    "tpu.trace_start"() <{level = 10 : i32, message = "bnd,bmd->bnm"}> : () -> ()
    %cst_48 = arith.constant dense<0.000000e+00> : vector<1x8x128xf32>
    %64 = tpu.matmul %61, %62, %cst_48 {dimension_numbers = #tpu.dot_dimension_numbers<[2], [2], [1], [1], [0, 0, 0, 1, 1, 1], [0], [0]>} : vector<1x8x8xf32>, vector<1x128x8xf32>, vector<1x8x128xf32> -> vector<1x8x128xf32>
    "tpu.trace_stop"() : () -> ()
    %65 = arith.addf %64, %2 : vector<1x8x128xf32>
    %cst_49 = arith.constant dense<0xFF800000> : vector<1x8xf32>
    %66 = vector.multi_reduction <maximumf>, %65, %cst_49 [2] : vector<1x8x128xf32> to vector<1x8xf32>
    %67 = vector.shape_cast %66 : vector<1x8xf32> to vector<1x8x1xf32>
    %68 = vector.broadcast %67 : vector<1x8x1xf32> to vector<1x8x128xf32>
    %69 = arith.subf %65, %68 : vector<1x8x128xf32>
    %70 = math.exp %69 : vector<1x8x128xf32>
    %cst_50 = arith.constant dense<0.000000e+00> : vector<1x8xf32>
    %71 = vector.multi_reduction <add>, %70, %cst_50 [2] : vector<1x8x128xf32> to vector<1x8xf32>
    %72 = vector.shape_cast %71 : vector<1x8xf32> to vector<1x8x1xf32>
    "tpu.trace_start"() <{level = 10 : i32, message = "bnm,bmd->bnd"}> : () -> ()
    %cst_51 = arith.constant dense<0.000000e+00> : vector<1x8x8xf32>
    %73 = tpu.matmul %70, %63, %cst_51 {dimension_numbers = #tpu.dot_dimension_numbers<[2], [1], [1], [2], [0, 0, 0, 1, 1, 2], [0], [0]>} : vector<1x8x128xf32>, vector<1x128x8xf32>, vector<1x8x8xf32> -> vector<1x8x8xf32>
    "tpu.trace_stop"() : () -> ()
    %74 = tpu.reciprocal %72 : vector<1x8x1xf32> -> vector<1x8x1xf32>
    %75 = vector.broadcast %74 : vector<1x8x1xf32> to vector<1x8x8xf32>
    %76 = arith.mulf %73, %75 : vector<1x8x8xf32>
    %77 = tpu.concatenate %28, %44, %60, %76 in 2 : vector<1x8x8xf32>, vector<1x8x8xf32>, vector<1x8x8xf32>, vector<1x8x8xf32> -> vector<1x8x32xf32>
    %78 = vector.shape_cast %77 : vector<1x8x32xf32> to vector<8x32xf32>
    %cst_52 = arith.constant dense<0.000000e+00> : vector<8x32xf32>
    %79 = tpu.matmul %78, %4, %cst_52 {dimension_numbers = #tpu.dot_dimension_numbers<[1], [0], [0], [1], [0, 0, 1, 1], [], []>} : vector<8x32xf32>, vector<32x32xf32>, vector<8x32xf32> -> vector<8x32xf32>
    %80 = vector.broadcast %5 : vector<1x32xf32> to vector<8x32xf32>
    %81 = arith.addf %79, %80 : vector<8x32xf32>
    %82 = vector.shape_cast %81 : vector<8x32xf32> to vector<1x8x32xf32>
    %c0_53 = arith.constant 0 : index
    %c0_54 = arith.constant 0 : index
    %c0_55 = arith.constant 0 : index
    %83 = vector.load %arg5[%c0_53, %c0_54, %c0_55] : memref<1x128x32xf32, #tpu.memory_space<vmem>>, vector<1x128x32xf32>
    "tpu.trace_start"() <{level = 10 : i32, message = "bne,bme->bnm"}> : () -> ()
    %cst_56 = arith.constant dense<0.000000e+00> : vector<1x8x128xf32>
    %84 = tpu.matmul %82, %83, %cst_56 {dimension_numbers = #tpu.dot_dimension_numbers<[2], [2], [1], [1], [0, 0, 0, 1, 1, 1], [0], [0]>} : vector<1x8x32xf32>, vector<1x128x32xf32>, vector<1x8x128xf32> -> vector<1x8x128xf32>
    "tpu.trace_stop"() : () -> ()
    %cst_57 = arith.constant 0.176776692 : f32
    %85 = vector.broadcast %cst_57 : f32 to vector<1x8x128xf32>
    %86 = arith.mulf %84, %85 : vector<1x8x128xf32>
    %87 = math.tanh %86 : vector<1x8x128xf32>
    %cst_58 = arith.constant 1.000000e+01 : f32
    %88 = vector.broadcast %cst_58 : f32 to vector<1x8x128xf32>
    %89 = arith.mulf %88, %87 : vector<1x8x128xf32>
    %90 = arith.addf %89, %2 : vector<1x8x128xf32>
    %cst_59 = arith.constant dense<0xFF800000> : vector<1x8xf32>
    %91 = vector.multi_reduction <maximumf>, %90, %cst_59 [2] : vector<1x8x128xf32> to vector<1x8xf32>
    %92 = vector.shape_cast %91 : vector<1x8xf32> to vector<1x8x1xf32>
    %93 = vector.broadcast %92 : vector<1x8x1xf32> to vector<1x8x128xf32>
    %94 = arith.subf %90, %93 : vector<1x8x128xf32>
    %95 = math.exp %94 : vector<1x8x128xf32>
    %cst_60 = arith.constant dense<0.000000e+00> : vector<1x8xf32>
    %96 = vector.multi_reduction <add>, %95, %cst_60 [2] : vector<1x8x128xf32> to vector<1x8xf32>
    %97 = vector.shape_cast %96 : vector<1x8xf32> to vector<1x8x1xf32>
    %98 = tpu.reciprocal %97 : vector<1x8x1xf32> -> vector<1x8x1xf32>
    %99 = vector.broadcast %98 : vector<1x8x1xf32> to vector<1x8x128xf32>
    %100 = arith.mulf %95, %99 : vector<1x8x128xf32>
    %c0_61 = arith.constant 0 : index
    %c0_62 = arith.constant 0 : index
    %c0_63 = arith.constant 0 : index
    %101 = vector.load %arg10[%c0_61, %c0_62, %c0_63] : memref<1x8x128xf32, #tpu.memory_space<vmem>>, vector<1x8x128xf32>
    tpu.vector_store %arg10[%c0_61, %c0_62, %c0_63], %100 {strides = array<i32>} : memref<1x8x128xf32, #tpu.memory_space<vmem>>, vector<1x8x128xf32>,
    return
  }
  func.func @transform_0(%arg0: i32) -> (i32, i32, i32) {
    %c0_i32 = arith.constant 0 : i32
    %c0_i32_0 = arith.constant 0 : i32
    %c0_i32_1 = arith.constant 0 : i32
    return %arg0, %c0_i32, %c0_i32_0 : i32, i32, i32
  }
  func.func @transform_1(%arg0: i32) -> (i32, i32, i32) {
    %c0_i32 = arith.constant 0 : i32
    %c0_i32_0 = arith.constant 0 : i32
    %c0_i32_1 = arith.constant 0 : i32
    return %arg0, %c0_i32, %c0_i32_0 : i32, i32, i32
  }
  func.func @transform_2(%arg0: i32) -> (i32, i32, i32) {
    %c0_i32 = arith.constant 0 : i32
    %c0_i32_0 = arith.constant 0 : i32
    %c0_i32_1 = arith.constant 0 : i32
    return %arg0, %c0_i32, %c0_i32_0 : i32, i32, i32
  }
  func.func @transform_3(%arg0: i32) -> (i32, i32, i32) {
    %c0_i32 = arith.constant 0 : i32
    %c0_i32_0 = arith.constant 0 : i32
    %c0_i32_1 = arith.constant 0 : i32
    return %arg0, %c0_i32, %c0_i32_0 : i32, i32, i32
  }
  func.func @transform_4(%arg0: i32) -> (i32, i32, i32) {
    %c0_i32 = arith.constant 0 : i32
    %c0_i32_0 = arith.constant 0 : i32
    %c0_i32_1 = arith.constant 0 : i32
    return %arg0, %c0_i32, %c0_i32_0 : i32, i32, i32
  }
  func.func @transform_5(%arg0: i32) -> (i32, i32, i32) {
    %c0_i32 = arith.constant 0 : i32
    %c0_i32_0 = arith.constant 0 : i32
    %c0_i32_1 = arith.constant 0 : i32
    return %arg0, %c0_i32, %c0_i32_0 : i32, i32, i32
  }
  func.func @transform_6(%arg0: i32) -> (i32, i32) {
    %c0_i32 = arith.constant 0 : i32
    %c0_i32_0 = arith.constant 0 : i32
    %c0_i32_1 = arith.constant 0 : i32
    return %c0_i32, %c0_i32_0 : i32, i32
  }
  func.func @transform_7(%arg0: i32) -> (i32, i32) {
    %c0_i32 = arith.constant 0 : i32
    %c0_i32_0 = arith.constant 0 : i32
    %c0_i32_1 = arith.constant 0 : i32
    return %c0_i32, %c0_i32_0 : i32, i32
  }
  func.func @transform_8(%arg0: i32) -> (i32, i32) {
    %c0_i32 = arith.constant 0 : i32
    %c0_i32_0 = arith.constant 0 : i32
    %c0_i32_1 = arith.constant 0 : i32
    return %c0_i32, %c0_i32_0 : i32, i32
  }
  func.func @transform_9(%arg0: i32) -> (i32, i32, i32) {
    %c0_i32 = arith.constant 0 : i32
    %c0_i32_0 = arith.constant 0 : i32
    %c0_i32_1 = arith.constant 0 : i32
    return %arg0, %c0_i32, %c0_i32_0 : i32, i32, i32
  }
}

</mosaic_0001>

<llo_original>
// kernel: tpu_custom_call.1
$region0: #{tpu_custom_call.1}
  #allocation0 [shape = 'u32[]', space=smem, size = 0x4, offset = 0x4, fixed_abs, tag = 'smem constant byte address 0x4 - core index']
  #allocation1 [shape = 'u32[144,128]{1,0:T(1,128)}', space=vmem, size = 0x12000, scoped, tag = 'internal scratch']
  %s0 = inlined_call_operand.vmem [shape: f32[2,8,32], index: 0, kind: input, shape index: {}]
  %s1 = inlined_call_operand.vmem [shape: f32[2,8,32], index: 1, kind: input, shape index: {}]
  %s2 = inlined_call_operand.vmem [shape: f32[2,128,32], index: 2, kind: input, shape index: {}]
  %s3 = inlined_call_operand.vmem [shape: f32[2,128,32], index: 3, kind: input, shape index: {}]
  %s4 = inlined_call_operand.vmem [shape: f32[2,128,32], index: 4, kind: input, shape index: {}]
  %s5 = inlined_call_operand.vmem [shape: f32[2,8,128], index: 5, kind: input, shape index: {}]
  %s6 = inlined_call_operand.vmem [shape: f32[32,32], index: 6, kind: input, shape index: {}]
  %s7 = inlined_call_operand.vmem [shape: f32[32,32], index: 7, kind: input, shape index: {}]
  %s8 = inlined_call_operand.vmem [shape: f32[1,32], index: 8, kind: input, shape index: {}]
  %s9 = inlined_call_operand.hbm [shape: f32[2,8,128], index: 9, kind: output, shape index: {}]
  %s10 = sld [smem:[#allocation0]]
  $region69: #{tpu_custom_call.1} parent=0
    _
  %s12 = ssub.s32 1, %s10
  %s13 = scalar_select 0, %s12, %s10
  $region1: #{tpu_custom_call.1} parent=0
    #allocation2 [shape = 'u8[8192]{0}', space=vmem, size = 0x2000, scoped, tag = 'output window, operand 0']
    #allocation3 [shape = 's32[2]{0}', space=sflag, size = 0x8, scoped, tag = 'scoped memory for tpu_custom_call.1']
    %14 = vsyncpa [#allocation3], 0
    %s15 = scalar_lea.sflag [#allocation3], 1
    %16 = vsyncpa %s15, 0
    loop: start=0, step=1, limit=4
    $region2: #{tpu_custom_call.1} parent=1 // loop_pre_header
      _
    $region3: #{tpu_custom_call.1} parent=1 // loop_header
      %s18 = sphi 0, %s22
      %p19 = scmp.ge.s32.totalorder %s18, 4
      %s28 = sphi 0, %s30
      %s31 = sphi 0, %s28
      %s32 = sphi 0, %s31
      %s48 = sphi 0, %s32
      %s54 = sphi 0, %s56
      %s57 = sphi 0, %s54
      %s58 = sphi 0, %s57
      %s74 = sphi 0, %s58
      %s80 = sphi 0, %s82
      %s83 = sphi 0, %s80
      %s84 = sphi 0, %s83
      %s100 = sphi 0, %s84
      %s106 = sphi 0, %s108
      %s109 = sphi 0, %s106
      %s110 = sphi 0, %s109
      %s126 = sphi 0, %s110
      %s132 = sphi 0, %s134
      %s135 = sphi 0, %s132
      %s136 = sphi 0, %s135
      %s152 = sphi 0, %s136
      %s158 = sphi 0, %s160
      %s161 = sphi 0, %s158
      %s162 = sphi 0, %s161
      %s178 = sphi 0, %s162
      %s182 = sphi 0, %s182
      %s184 = sphi 0, %s182
      %s185 = sphi 0, %s184
      %s199 = sphi 0, %s185
      %s203 = sphi 0, %s203
      %s205 = sphi 0, %s203
      %s206 = sphi 0, %s205
      %s220 = sphi 0, %s206
      %s224 = sphi 0, %s224
      %s226 = sphi 0, %s224
      %s227 = sphi 0, %s226
      %s241 = sphi 0, %s227
      %s247 = sphi 0, %s249
      %s250 = sphi 0, %s247
      %s251 = sphi 0, %s250
      %s267 = sphi 0, %s251
    $region4: #{tpu_custom_call.1} parent=1 // loop_header_branch
      %21 = sbr.rel (%p19) target = $region8
    $region5: #{tpu_custom_call.1} parent=1 // loop_body
      %s23 = ssub.s32 %s18, 1
      %s24 = ssub.s32 %s18, 2
      %s25 = sadd.s32 %s18, 1
      %s26 = ssub.s32 %s18, %s25
      %p27 = scmp.eq.s32.totalorder %s26, 0
      %s29 = sadd.s32 %s28, 1
      %s30 = scalar_select %p27, %s28, %s29
      %p33 = pneg %p27
      %p34 = scmp.eq.s32.totalorder %s18, 1
      %p35 = por %p33, %p34
      %p36 = scmp.ne.s32.totalorder %s28, %s31
      %p37 = scmp.eq.s32.totalorder %s18, 0
      %p38 = por %p36, %p37
      %p39 = scmp.ne.s32.totalorder %s28, %s31
      %p40 = scmp.eq.s32.totalorder %s23, 1
      %p41 = por %p39, %p40
      %p42 = scmp.ne.s32.totalorder %s31, %s32
      %p43 = scmp.eq.s32.totalorder %s23, 0
      %p44 = por %p42, %p43
      %p45 = scmp.ne.s32.totalorder %s31, %s32
      %p46 = scmp.eq.s32.totalorder %s24, 1
      %p47 = por %p45, %p46
      %p49 = scmp.ne.s32.totalorder %s32, %s48
      %p50 = scmp.eq.s32.totalorder %s24, 0
      %p51 = por %p49, %p50
      %s52 = ssub.s32 %s18, %s25
      %p53 = scmp.eq.s32.totalorder %s52, 0
      %s55 = sadd.s32 %s54, 1
      %s56 = scalar_select %p53, %s54, %s55
      %p59 = pneg %p53
      %p60 = scmp.eq.s32.totalorder %s18, 1
      %p61 = por %p59, %p60
      %p62 = scmp.ne.s32.totalorder %s54, %s57
      %p63 = scmp.eq.s32.totalorder %s18, 0
      %p64 = por %p62, %p63
      %p65 = scmp.ne.s32.totalorder %s54, %s57
      %p66 = scmp.eq.s32.totalorder %s23, 1
      %p67 = por %p65, %p66
      %p68 = scmp.ne.s32.totalorder %s57, %s58
      %p69 = scmp.eq.s32.totalorder %s23, 0
      %p70 = por %p68, %p69
      %p71 = scmp.ne.s32.totalorder %s57, %s58
      %p72 = scmp.eq.s32.totalorder %s24, 1
      %p73 = por %p71, %p72
      %p75 = scmp.ne.s32.totalorder %s58, %s74
      %p76 = scmp.eq.s32.totalorder %s24, 0
      %p77 = por %p75, %p76
      %s78 = ssub.s32 %s18, %s25
      %p79 = scmp.eq.s32.totalorder %s78, 0
      %s81 = sadd.s32 %s80, 1
      %s82 = scalar_select %p79, %s80, %s81
      %p85 = pneg %p79
      %p86 = scmp.eq.s32.totalorder %s18, 1
      %p87 = por %p85, %p86
      %p88 = scmp.ne.s32.totalorder %s80, %s83
      %p89 = scmp.eq.s32.totalorder %s18, 0
      %p90 = por %p88, %p89
      %p91 = scmp.ne.s32.totalorder %s80, %s83
      %p92 = scmp.eq.s32.totalorder %s23, 1
      %p93 = por %p91, %p92
      %p94 = scmp.ne.s32.totalorder %s83, %s84
      %p95 = scmp.eq.s32.totalorder %s23, 0
      %p96 = por %p94, %p95
      %p97 = scmp.ne.s32.totalorder %s83, %s84
      %p98 = scmp.eq.s32.totalorder %s24, 1
      %p99 = por %p97, %p98
      %p101 = scmp.ne.s32.totalorder %s84, %s100
      %p102 = scmp.eq.s32.totalorder %s24, 0
      %p103 = por %p101, %p102
      %s104 = ssub.s32 %s18, %s25
      %p105 = scmp.eq.s32.totalorder %s104, 0
      %s107 = sadd.s32 %s106, 1
      %s108 = scalar_select %p105, %s106, %s107
      %p111 = pneg %p105
      %p112 = scmp.eq.s32.totalorder %s18, 1
      %p113 = por %p111, %p112
      %p114 = scmp.ne.s32.totalorder %s106, %s109
      %p115 = scmp.eq.s32.totalorder %s18, 0
      %p116 = por %p114, %p115
      %p117 = scmp.ne.s32.totalorder %s106, %s109
      %p118 = scmp.eq.s32.totalorder %s23, 1
      %p119 = por %p117, %p118
      %p120 = scmp.ne.s32.totalorder %s109, %s110
      %p121 = scmp.eq.s32.totalorder %s23, 0
      %p122 = por %p120, %p121
      %p123 = scmp.ne.s32.totalorder %s109, %s110
      %p124 = scmp.eq.s32.totalorder %s24, 1
      %p125 = por %p123, %p124
      %p127 = scmp.ne.s32.totalorder %s110, %s126
      %p128 = scmp.eq.s32.totalorder %s24, 0
      %p129 = por %p127, %p128
      %s130 = ssub.s32 %s18, %s25
      %p131 = scmp.eq.s32.totalorder %s130, 0
      %s133 = sadd.s32 %s132, 1
      %s134 = scalar_select %p131, %s132, %s133
      %p137 = pneg %p131
      %p138 = scmp.eq.s32.totalorder %s18, 1
      %p139 = por %p137, %p138
      %p140 = scmp.ne.s32.totalorder %s132, %s135
      %p141 = scmp.eq.s32.totalorder %s18, 0
      %p142 = por %p140, %p141
      %p143 = scmp.ne.s32.totalorder %s132, %s135
      %p144 = scmp.eq.s32.totalorder %s23, 1
      %p145 = por %p143, %p144
      %p146 = scmp.ne.s32.totalorder %s135, %s136
      %p147 = scmp.eq.s32.totalorder %s23, 0
      %p148 = por %p146, %p147
      %p149 = scmp.ne.s32.totalorder %s135, %s136
      %p150 = scmp.eq.s32.totalorder %s24, 1
      %p151 = por %p149, %p150
      %p153 = scmp.ne.s32.totalorder %s136, %s152
      %p154 = scmp.eq.s32.totalorder %s24, 0
      %p155 = por %p153, %p154
      %s156 = ssub.s32 %s18, %s25
      %p157 = scmp.eq.s32.totalorder %s156, 0
      %s159 = sadd.s32 %s158, 1
      %s160 = scalar_select %p157, %s158, %s159
      %p163 = pneg %p157
      %p164 = scmp.eq.s32.totalorder %s18, 1
      %p165 = por %p163, %p164
      %p166 = scmp.ne.s32.totalorder %s158, %s161
      %p167 = scmp.eq.s32.totalorder %s18, 0
      %p168 = por %p166, %p167
      %p169 = scmp.ne.s32.totalorder %s158, %s161
      %p170 = scmp.eq.s32.totalorder %s23, 1
      %p171 = por %p169, %p170
      %p172 = scmp.ne.s32.totalorder %s161, %s162
      %p173 = scmp.eq.s32.totalorder %s23, 0
      %p174 = por %p172, %p173
      %p175 = scmp.ne.s32.totalorder %s161, %s162
      %p176 = scmp.eq.s32.totalorder %s24, 1
      %p177 = por %p175, %p176
      %p179 = scmp.ne.s32.totalorder %s162, %s178
      %p180 = scmp.eq.s32.totalorder %s24, 0
      %p181 = por %p179, %p180
      %s183 = sadd.s32 %s182, 1
      %p186 = scmp.eq.s32.totalorder %s18, 1
      %p187 = scmp.ne.s32.totalorder %s182, %s184
      %p188 = scmp.eq.s32.totalorder %s18, 0
      %p189 = por %p187, %p188
      %p190 = scmp.ne.s32.totalorder %s182, %s184
      %p191 = scmp.eq.s32.totalorder %s23, 1
      %p192 = por %p190, %p191
      %p193 = scmp.ne.s32.totalorder %s184, %s185
      %p194 = scmp.eq.s32.totalorder %s23, 0
      %p195 = por %p193, %p194
      %p196 = scmp.ne.s32.totalorder %s184, %s185
      %p197 = scmp.eq.s32.totalorder %s24, 1
      %p198 = por %p196, %p197
      %p200 = scmp.ne.s32.totalorder %s185, %s199
      %p201 = scmp.eq.s32.totalorder %s24, 0
      %p202 = por %p200, %p201
      %s204 = sadd.s32 %s203, 1
      %p207 = scmp.eq.s32.totalorder %s18, 1
      %p208 = scmp.ne.s32.totalorder %s203, %s205
      %p209 = scmp.eq.s32.totalorder %s18, 0
      %p210 = por %p208, %p209
      %p211 = scmp.ne.s32.totalorder %s203, %s205
      %p212 = scmp.eq.s32.totalorder %s23, 1
      %p213 = por %p211, %p212
      %p214 = scmp.ne.s32.totalorder %s205, %s206
      %p215 = scmp.eq.s32.totalorder %s23, 0
      %p216 = por %p214, %p215
      %p217 = scmp.ne.s32.totalorder %s205, %s206
      %p218 = scmp.eq.s32.totalorder %s24, 1
      %p219 = por %p217, %p218
      %p221 = scmp.ne.s32.totalorder %s206, %s220
      %p222 = scmp.eq.s32.totalorder %s24, 0
      %p223 = por %p221, %p222
      %s225 = sadd.s32 %s224, 1
      %p228 = scmp.eq.s32.totalorder %s18, 1
      %p229 = scmp.ne.s32.totalorder %s224, %s226
      %p230 = scmp.eq.s32.totalorder %s18, 0
      %p231 = por %p229, %p230
      %p232 = scmp.ne.s32.totalorder %s224, %s226
      %p233 = scmp.eq.s32.totalorder %s23, 1
      %p234 = por %p232, %p233
      %p235 = scmp.ne.s32.totalorder %s226, %s227
      %p236 = scmp.eq.s32.totalorder %s23, 0
      %p237 = por %p235, %p236
      %p238 = scmp.ne.s32.totalorder %s226, %s227
      %p239 = scmp.eq.s32.totalorder %s24, 1
      %p240 = por %p238, %p239
      %p242 = scmp.ne.s32.totalorder %s227, %s241
      %p243 = scmp.eq.s32.totalorder %s24, 0
      %p244 = por %p242, %p243
      %s245 = ssub.s32 %s18, %s25
      %p246 = scmp.eq.s32.totalorder %s245, 0
      %s248 = sadd.s32 %s247, 1
      %s249 = scalar_select %p246, %s247, %s248
      %p252 = pneg %p246
      %p253 = scmp.eq.s32.totalorder %s18, 1
      %p254 = por %p252, %p253
      %p255 = scmp.ne.s32.totalorder %s247, %s250
      %p256 = scmp.eq.s32.totalorder %s18, 0
      %p257 = por %p255, %p256
      %p258 = scmp.ne.s32.totalorder %s247, %s250
      %p259 = scmp.eq.s32.totalorder %s23, 1
      %p260 = por %p258, %p259
      %p261 = scmp.ne.s32.totalorder %s250, %s251
      %p262 = scmp.eq.s32.totalorder %s23, 0
      %p263 = por %p261, %p262
      %p264 = scmp.ne.s32.totalorder %s250, %s251
      %p265 = scmp.eq.s32.totalorder %s24, 1
      %p266 = por %p264, %p265
      %p268 = scmp.ne.s32.totalorder %s251, %s267
      %p269 = scmp.eq.s32.totalorder %s24, 0
      %p270 = por %p268, %p269
      %p271 = scmp.le.s32.totalorder 1, %s18
      %p272 = scmp.lt.s32.totalorder %s18, 3
      %p273 = pnand %p271, %p272
      %p274 = pneg %p273
      // Predicated region
      $region9: #{tpu_custom_call.1} parent=5 // pred_check
        _
      $region10: #{tpu_custom_call.1} parent=5 // pred_check_branch
        %276 = sbr.rel (%p273) target = $region12
      $region11: #{tpu_custom_call.1} parent=5 // pred_region
        %s277 = ssub.s32 %s18, 1
        // Predicated region
        $region13: #{tpu_custom_call.1} parent=11 // pred_check
          %p278 = pneg %p195
        $region14: #{tpu_custom_call.1} parent=11 // pred_check_branch
          %280 = sbr.rel (%p278) target = $region16
        $region15: #{tpu_custom_call.1} parent=11 // pred_region
          _
        $region16: #{tpu_custom_call.1} parent=11 // pred_fallthru
          _
        // Predicated region
        $region17: #{tpu_custom_call.1} parent=11 // pred_check
          %p281 = pneg %p216
        $region18: #{tpu_custom_call.1} parent=11 // pred_check_branch
          %283 = sbr.rel (%p281) target = $region20
        $region19: #{tpu_custom_call.1} parent=11 // pred_region
          _
        $region20: #{tpu_custom_call.1} parent=11 // pred_fallthru
          _
        // Predicated region
        $region21: #{tpu_custom_call.1} parent=11 // pred_check
          %p284 = pneg %p237
        $region22: #{tpu_custom_call.1} parent=11 // pred_check_branch
          %286 = sbr.rel (%p284) target = $region24
        $region23: #{tpu_custom_call.1} parent=11 // pred_region
          _
        $region24: #{tpu_custom_call.1} parent=11 // pred_fallthru
          _
      $region12: #{tpu_custom_call.1} parent=5 // pred_fallthru
        _
      %p287 = scmp.lt.s32.totalorder %s18, 2
      // Predicated region
      $region25: #{tpu_custom_call.1} parent=5 // pred_check
        %p288 = pneg %p287
      $region26: #{tpu_custom_call.1} parent=5 // pred_check_branch
        %290 = sbr.rel (%p288) target = $region28
      $region27: #{tpu_custom_call.1} parent=5 // pred_region
        // Predicated region
        $region29: #{tpu_custom_call.1} parent=27 // pred_check
          %p291 = pneg %p38
        $region30: #{tpu_custom_call.1} parent=27 // pred_check_branch
          %293 = sbr.rel (%p291) target = $region32
        $region31: #{tpu_custom_call.1} parent=27 // pred_region
          %p294 = scmp.lt.s32.totalorder %s18, 1
          %s295 = scalar_select %p294, %s18, 1
          %s296 = smul.addr %s295, 8
          %s297 = scalar_lea.vmem %s0, %s296
        $region32: #{tpu_custom_call.1} parent=27 // pred_fallthru
          _
        // Predicated region
        $region33: #{tpu_custom_call.1} parent=27 // pred_check
          %p298 = pneg %p64
        $region34: #{tpu_custom_call.1} parent=27 // pred_check_branch
          %300 = sbr.rel (%p298) target = $region36
        $region35: #{tpu_custom_call.1} parent=27 // pred_region
          %p301 = scmp.lt.s32.totalorder %s18, 1
          %s302 = scalar_select %p301, %s18, 1
          %s303 = smul.addr %s302, 8
          %s304 = scalar_lea.vmem %s1, %s303
        $region36: #{tpu_custom_call.1} parent=27 // pred_fallthru
          _
        // Predicated region
        $region37: #{tpu_custom_call.1} parent=27 // pred_check
          %p305 = pneg %p90
        $region38: #{tpu_custom_call.1} parent=27 // pred_check_branch
          %307 = sbr.rel (%p305) target = $region40
        $region39: #{tpu_custom_call.1} parent=27 // pred_region
          %p308 = scmp.lt.s32.totalorder %s18, 1
          %s309 = scalar_select %p308, %s18, 1
          %s310 = smul.addr %s309, 16
          %s311 = smul.addr %s310, 8
          %s312 = scalar_lea.vmem %s2, %s311
        $region40: #{tpu_custom_call.1} parent=27 // pred_fallthru
          _
        // Predicated region
        $region41: #{tpu_custom_call.1} parent=27 // pred_check
          %p313 = pneg %p116
        $region42: #{tpu_custom_call.1} parent=27 // pred_check_branch
          %315 = sbr.rel (%p313) target = $region44
        $region43: #{tpu_custom_call.1} parent=27 // pred_region
          %p316 = scmp.lt.s32.totalorder %s18, 1
          %s317 = scalar_select %p316, %s18, 1
          %s318 = smul.addr %s317, 16
          %s319 = smul.addr %s318, 8
          %s320 = scalar_lea.vmem %s3, %s319
        $region44: #{tpu_custom_call.1} parent=27 // pred_fallthru
          _
        // Predicated region
        $region45: #{tpu_custom_call.1} parent=27 // pred_check
          %p321 = pneg %p142
        $region46: #{tpu_custom_call.1} parent=27 // pred_check_branch
          %323 = sbr.rel (%p321) target = $region48
        $region47: #{tpu_custom_call.1} parent=27 // pred_region
          %p324 = scmp.lt.s32.totalorder %s18, 1
          %s325 = scalar_select %p324, %s18, 1
          %s326 = smul.addr %s325, 16
          %s327 = smul.addr %s326, 8
          %s328 = scalar_lea.vmem %s4, %s327
        $region48: #{tpu_custom_call.1} parent=27 // pred_fallthru
          _
        // Predicated region
        $region49: #{tpu_custom_call.1} parent=27 // pred_check
          %p329 = pneg %p168
        $region50: #{tpu_custom_call.1} parent=27 // pred_check_branch
          %331 = sbr.rel (%p329) target = $region52
        $region51: #{tpu_custom_call.1} parent=27 // pred_region
          %p332 = scmp.lt.s32.totalorder %s18, 1
          %s333 = scalar_select %p332, %s18, 1
          %s334 = smul.addr %s333, 8
          %s335 = scalar_lea.vmem %s5, %s334
        $region52: #{tpu_custom_call.1} parent=27 // pred_fallthru
          _
      $region28: #{tpu_custom_call.1} parent=5 // pred_fallthru
        _
      %p336 = scmp.le.s32.totalorder 1, %s18
      %p337 = scmp.lt.s32.totalorder %s18, 3
      %p338 = pnand %p336, %p337
      %p339 = pneg %p338
      // Predicated region
      $region53: #{tpu_custom_call.1} parent=5 // pred_check
        _
      $region54: #{tpu_custom_call.1} parent=5 // pred_check_branch
        %341 = sbr.rel (%p338) target = $region56
      $region55: #{tpu_custom_call.1} parent=5 // pred_region
        %s342 = ssub.s32 %s18, 1
        %p343 = scmp.lt.s32.totalorder %s23, 1
        %s344 = scalar_select %p343, %s23, 1
        %s345 = smul.addr %s344, 8
        %s346 = scalar_lea.vmem %s0, %s345
        %p347 = pneg %p44
        %p348 = pneg %p41
        %p349 = scmp.lt.s32.totalorder %s23, 1
        %s350 = scalar_select %p349, %s23, 1
        %s351 = smul.addr %s350, 8
        %s352 = scalar_lea.vmem %s1, %s351
        %p353 = pneg %p70
        %p354 = pneg %p67
        %p355 = scmp.lt.s32.totalorder %s23, 1
        %s356 = scalar_select %p355, %s23, 1
        %s357 = smul.addr %s356, 16
        %s358 = smul.addr %s357, 8
        %s359 = scalar_lea.vmem %s2, %s358
        %p360 = pneg %p96
        %p361 = pneg %p93
        %p362 = scmp.lt.s32.totalorder %s23, 1
        %s363 = scalar_select %p362, %s23, 1
        %s364 = smul.addr %s363, 16
        %s365 = smul.addr %s364, 8
        %s366 = scalar_lea.vmem %s3, %s365
        %p367 = pneg %p122
        %p368 = pneg %p119
        %p369 = scmp.lt.s32.totalorder %s23, 1
        %s370 = scalar_select %p369, %s23, 1
        %s371 = smul.addr %s370, 16
        %s372 = smul.addr %s371, 8
        %s373 = scalar_lea.vmem %s4, %s372
        %p374 = pneg %p148
        %p375 = pneg %p145
        %p376 = scmp.lt.s32.totalorder %s23, 1
        %s377 = scalar_select %p376, %s23, 1
        %s378 = smul.addr %s377, 8
        %s379 = scalar_lea.vmem %s5, %s378
        %p380 = pneg %p174
        %p381 = pneg %p171
        %p382 = pneg %p195
        %p383 = pneg %p192
        %p384 = pneg %p216
        %p385 = pneg %p213
        %p386 = pneg %p237
        %p387 = pneg %p234
        %p388 = pneg %p263
        %p389 = pneg %p260
        %s390 = sand.u32 %s250, 1
        %s391 = scalar_lea.sflag [#allocation3], %s390
        %s392 = sand.u32 %s250, 1
        %s393 = smul.addr %s392, 8
        %s394 = scalar_lea.vmem [#allocation2], %s393
        %p395 = scmp.lt.s32.totalorder %s23, 1
        %s396 = scalar_select %p395, %s23, 1
        %s397 = smul.addr %s396, 8
        %s398 = scalar_lea.vmem %s0, %s397
        %p399 = scmp.lt.s32.totalorder %s23, 1
        %s400 = scalar_select %p399, %s23, 1
        %s401 = smul.addr %s400, 8
        %s402 = scalar_lea.vmem %s1, %s401
        %p403 = scmp.lt.s32.totalorder %s23, 1
        %s404 = scalar_select %p403, %s23, 1
        %s405 = smul.addr %s404, 16
        %s406 = smul.addr %s405, 8
        %s407 = scalar_lea.vmem %s2, %s406
        %p408 = scmp.lt.s32.totalorder %s23, 1
        %s409 = scalar_select %p408, %s23, 1
        %s410 = smul.addr %s409, 16
        %s411 = smul.addr %s410, 8
        %s412 = scalar_lea.vmem %s3, %s411
        %p413 = scmp.lt.s32.totalorder %s23, 1
        %s414 = scalar_select %p413, %s23, 1
        %s415 = smul.addr %s414, 16
        %s416 = smul.addr %s415, 8
        %s417 = scalar_lea.vmem %s4, %s416
        %p418 = scmp.lt.s32.totalorder %s23, 1
        %s419 = scalar_select %p418, %s23, 1
        %s420 = smul.addr %s419, 8
        %s421 = scalar_lea.vmem %s5, %s420
        %v422 = vld [vmem:[%s398] sm:$0xff]
        %v423 = vld [vmem:[%s402] sm:$0xff]
        %v424 = vld [vmem:[%s421] sm:$0xff]
        %v425 = vld [vmem:[%s6] sm:$0xff]
        %v426 = vld [vmem:[%s6 + $0x8] sm:$0xff]
        %v427 = vld [vmem:[%s6 + $0x10] sm:$0xff]
        %v428 = vld [vmem:[%s6 + $0x18] sm:$0xff]
        %v429 = vld [vmem:[%s7] sm:$0xff]
        %v430 = vld [vmem:[%s7 + $0x8] sm:$0xff]
        %v431 = vld [vmem:[%s7 + $0x10] sm:$0xff]
        %v432 = vld [vmem:[%s7 + $0x18] sm:$0xff]
        %v433 = vld [vmem:[%s8] sm:$0x1]
        %vm434 = vcmask 261120
        %v436 = vsel %vm434, %v422, 0
        %438 = vmatprep.subr.mxu0 0.0
        %439 = vmatpush1.msra.mxu0 0.0
        %440 = vmatprep.subr.mxu0 0.0
        %441 = vmatpush1.msra.mxu0 0.0
        %442 = vmatprep.subr.mxu0 0.0
        %443 = vmatpush1.msra.mxu0 0.0
        %444 = vmatprep.subr.mxu0 0.0
        %445 = vmatpush1.msra.mxu0 0.0
        %446 = vmatprep.subr.mxu0 0.0
        %447 = vmatpush1.msra.mxu0 0.0
        %448 = vmatprep.subr.mxu0 0.0
        %449 = vmatpush1.msra.mxu0 0.0
        %450 = vmatprep.subr.mxu0 0.0
        %451 = vmatpush1.msra.mxu0 0.0
        %452 = vmatprep.subr.mxu0 0.0
        %453 = vmatpush1.msra.mxu0 0.0
        %454 = vmatprep.subr.mxu0 0.0
        %455 = vmatpush1.msra.mxu0 0.0
        %456 = vmatprep.subr.mxu0 0.0
        %457 = vmatpush1.msra.mxu0 0.0
        %458 = vmatprep.subr.mxu0 0.0
        %459 = vmatpush1.msra.mxu0 0.0
        %460 = vmatprep.subr.mxu0 0.0
        %461 = vmatpush1.msra.mxu0 0.0
        %462 = vmatprep.subr.mxu0 0.0
        %463 = vmatpush1.msra.mxu0 %v428
        %464 = vmatprep.subr.mxu0 0.0
        %465 = vmatpush1.msra.mxu0 %v427
        %466 = vmatprep.subr.mxu0 0.0
        %467 = vmatpush1.msra.mxu0 %v426
        %468 = vmatprep.subr.mxu0 0.0
        %469 = vmatpush1.msra.mxu0 %v425
        %470 = vmatprep.subr.mxu0 0.0
        %471 = vmatpush2.msra.mxu0 0.0
        %472 = vmatprep.subr.mxu0 0.0
        %473 = vmatpush2.msra.mxu0 0.0
        %474 = vmatprep.subr.mxu0 0.0
        %475 = vmatpush2.msra.mxu0 0.0
        %476 = vmatprep.subr.mxu0 0.0
        %477 = vmatpush2.msra.mxu0 0.0
        %478 = vmatprep.subr.mxu0 0.0
        %479 = vmatpush2.msra.mxu0 0.0
        %480 = vmatprep.subr.mxu0 0.0
        %481 = vmatpush2.msra.mxu0 0.0
        %482 = vmatprep.subr.mxu0 0.0
        %483 = vmatpush2.msra.mxu0 0.0
        %484 = vmatprep.subr.mxu0 0.0
        %485 = vmatpush2.msra.mxu0 0.0
        %486 = vmatprep.subr.mxu0 0.0
        %487 = vmatpush2.msra.mxu0 0.0
        %488 = vmatprep.subr.mxu0 0.0
        %489 = vmatpush2.msra.mxu0 0.0
        %490 = vmatprep.subr.mxu0 0.0
        %491 = vmatpush2.msra.mxu0 0.0
        %492 = vmatprep.subr.mxu0 0.0
        %493 = vmatpush2.msra.mxu0 0.0
        %494 = vmatprep.subr.mxu0 0.0
        %495 = vmatpush2.msra.mxu0 0.0
        %496 = vmatprep.subr.mxu0 0.0
        %497 = vmatpush2.msra.mxu0 0.0
        %498 = vmatprep.subr.mxu0 0.0
        %499 = vmatpush2.msra.mxu0 0.0
        %500 = vmatprep.subr.mxu0 0.0
        %501 = vmatpush2.msra.mxu0 0.0
        %502 = vmatprep.mubr.f32.mxu0 0.0
        %503 = vmatmul.mubr.f32.gmra.mxu0 %v436
        %v504 = vpop.f32.mrf.mxu0
        %v505 = vadd.f32 0.0, %v504
        %v506 = vpop.f32.mrf.mxu0
        %507 = vdwg.mxu0
        %v508 = vadd.f32 %v423, %v505
        %v509 = vmul.f32 %v508, 0.35355338
        %v510 = vld [vmem:[%s407] sm:$0xff]
        %v511 = vld [vmem:[%s407 + $0x8] sm:$0xff]
        %v512 = vld [vmem:[%s407 + $0x10] sm:$0xff]
        %v513 = vld [vmem:[%s407 + $0x18] sm:$0xff]
        %v514 = vld [vmem:[%s407 + $0x20] sm:$0xff]
        %v515 = vld [vmem:[%s407 + $0x28] sm:$0xff]
        %v516 = vld [vmem:[%s407 + $0x30] sm:$0xff]
        %v517 = vld [vmem:[%s407 + $0x38] sm:$0xff]
        %v518 = vld [vmem:[%s407 + $0x40] sm:$0xff]
        %v519 = vld [vmem:[%s407 + $0x48] sm:$0xff]
        %v520 = vld [vmem:[%s407 + $0x50] sm:$0xff]
        %v521 = vld [vmem:[%s407 + $0x58] sm:$0xff]
        %v522 = vld [vmem:[%s407 + $0x60] sm:$0xff]
        %v523 = vld [vmem:[%s407 + $0x68] sm:$0xff]
        %v524 = vld [vmem:[%s407 + $0x70] sm:$0xff]
        %v525 = vld [vmem:[%s407 + $0x78] sm:$0xff]
        %v526 = vld [vmem:[%s412] sm:$0xff]
        %v527 = vld [vmem:[%s412 + $0x8] sm:$0xff]
        %v528 = vld [vmem:[%s412 + $0x10] sm:$0xff]
        %v529 = vld [vmem:[%s412 + $0x18] sm:$0xff]
        %v530 = vld [vmem:[%s412 + $0x20] sm:$0xff]
        %v531 = vld [vmem:[%s412 + $0x28] sm:$0xff]
        %v532 = vld [vmem:[%s412 + $0x30] sm:$0xff]
        %v533 = vld [vmem:[%s412 + $0x38] sm:$0xff]
        %v534 = vld [vmem:[%s412 + $0x40] sm:$0xff]
        %v535 = vld [vmem:[%s412 + $0x48] sm:$0xff]
        %v536 = vld [vmem:[%s412 + $0x50] sm:$0xff]
        %v537 = vld [vmem:[%s412 + $0x58] sm:$0xff]
        %v538 = vld [vmem:[%s412 + $0x60] sm:$0xff]
        %v539 = vld [vmem:[%s412 + $0x68] sm:$0xff]
        %v540 = vld [vmem:[%s412 + $0x70] sm:$0xff]
        %v541 = vld [vmem:[%s412 + $0x78] sm:$0xff]
        %vm542 = vcmask 64512
        %v544 = vsel %vm542, %v509, 0
        %v547 = vsel %vm542, %v510, 0
        %v550 = vsel %vm542, %v511, 0
        %v553 = vsel %vm542, %v512, 0
        %v556 = vsel %vm542, %v513, 0
        %v559 = vsel %vm542, %v514, 0
        %v562 = vsel %vm542, %v515, 0
        %v565 = vsel %vm542, %v516, 0
        %v568 = vsel %vm542, %v517, 0
        %v571 = vsel %vm542, %v518, 0
        %v574 = vsel %vm542, %v519, 0
        %v577 = vsel %vm542, %v520, 0
        %v580 = vsel %vm542, %v521, 0
        %v583 = vsel %vm542, %v522, 0
        %v586 = vsel %vm542, %v523, 0
        %v589 = vsel %vm542, %v524, 0
        %v592 = vsel %vm542, %v525, 0
        %594 = vmatprep.subr.mxu0 0.0
        %595 = vmatpush1.xpose.msra.mxu0 %v592
        %596 = vmatprep.subr.mxu0 0.0
        %597 = vmatpush1.xpose.msra.mxu0 %v589
        %598 = vmatprep.subr.mxu0 0.0
        %599 = vmatpush1.xpose.msra.mxu0 %v586
        %600 = vmatprep.subr.mxu0 0.0
        %601 = vmatpush1.xpose.msra.mxu0 %v583
        %602 = vmatprep.subr.mxu0 0.0
        %603 = vmatpush1.xpose.msra.mxu0 %v580
        %604 = vmatprep.subr.mxu0 0.0
        %605 = vmatpush1.xpose.msra.mxu0 %v577
        %606 = vmatprep.subr.mxu0 0.0
        %607 = vmatpush1.xpose.msra.mxu0 %v574
        %608 = vmatprep.subr.mxu0 0.0
        %609 = vmatpush1.xpose.msra.mxu0 %v571
        %610 = vmatprep.subr.mxu0 0.0
        %611 = vmatpush1.xpose.msra.mxu0 %v568
        %612 = vmatprep.subr.mxu0 0.0
        %613 = vmatpush1.xpose.msra.mxu0 %v565
        %614 = vmatprep.subr.mxu0 0.0
        %615 = vmatpush1.xpose.msra.mxu0 %v562
        %616 = vmatprep.subr.mxu0 0.0
        %617 = vmatpush1.xpose.msra.mxu0 %v559
        %618 = vmatprep.subr.mxu0 0.0
        %619 = vmatpush1.xpose.msra.mxu0 %v556
        %620 = vmatprep.subr.mxu0 0.0
        %621 = vmatpush1.xpose.msra.mxu0 %v553
        %622 = vmatprep.subr.mxu0 0.0
        %623 = vmatpush1.xpose.msra.mxu0 %v550
        %624 = vmatprep.subr.mxu0 0.0
        %625 = vmatpush1.xpose.msra.mxu0 %v547
        %626 = vmatprep.subr.mxu0 0.0
        %627 = vmatpush2.xpose.msra.mxu0 0.0
        %628 = vmatprep.subr.mxu0 0.0
        %629 = vmatpush2.xpose.msra.mxu0 0.0
        %630 = vmatprep.subr.mxu0 0.0
        %631 = vmatpush2.xpose.msra.mxu0 0.0
        %632 = vmatprep.subr.mxu0 0.0
        %633 = vmatpush2.xpose.msra.mxu0 0.0
        %634 = vmatprep.subr.mxu0 0.0
        %635 = vmatpush2.xpose.msra.mxu0 0.0
        %636 = vmatprep.subr.mxu0 0.0
        %637 = vmatpush2.xpose.msra.mxu0 0.0
        %638 = vmatprep.subr.mxu0 0.0
        %639 = vmatpush2.xpose.msra.mxu0 0.0
        %640 = vmatprep.subr.mxu0 0.0
        %641 = vmatpush2.xpose.msra.mxu0 0.0
        %642 = vmatprep.subr.mxu0 0.0
        %643 = vmatpush2.xpose.msra.mxu0 0.0
        %644 = vmatprep.subr.mxu0 0.0
        %645 = vmatpush2.xpose.msra.mxu0 0.0
        %646 = vmatprep.subr.mxu0 0.0
        %647 = vmatpush2.xpose.msra.mxu0 0.0
        %648 = vmatprep.subr.mxu0 0.0
        %649 = vmatpush2.xpose.msra.mxu0 0.0
        %650 = vmatprep.subr.mxu0 0.0
        %651 = vmatpush2.xpose.msra.mxu0 0.0
        %652 = vmatprep.subr.mxu0 0.0
        %653 = vmatpush2.xpose.msra.mxu0 0.0
        %654 = vmatprep.subr.mxu0 0.0
        %655 = vmatpush2.xpose.msra.mxu0 0.0
        %656 = vmatprep.subr.mxu0 0.0
        %657 = vmatpush2.xpose.msra.mxu0 0.0
        %658 = vmatprep.mubr.f32.mxu0 0.0
        %659 = vmatmul.mubr.f32.gmra.mxu0 %v544
        %v660 = vpop.f32.mrf.mxu0
        %v661 = vadd.f32 %v424, %v660
        %v662 = vpop.f32.mrf.mxu0
        %663 = vdwg.mxu0
        %664 = vmax.xlane.f32.xlu0 %v661
        %v665 = vpop.xlane.xlu0 %664
        %v666 = vsub.f32 %v661, %v665
        %v667 = vmul.f32 %v666, 1.442695
        %v668 = vpow.pop %v667
        %669 = vadd.xlane.f32.xlu0 %v668
        %v670 = vpop.xlane.xlu0 %669
        %671 = vmatprep.subr.mxu0 0.0
        %672 = vmatpush1.msra.mxu0 %v541
        %673 = vmatprep.subr.mxu0 0.0
        %674 = vmatpush1.msra.mxu0 %v540
        %675 = vmatprep.subr.mxu0 0.0
        %676 = vmatpush1.msra.mxu0 %v539
        %677 = vmatprep.subr.mxu0 0.0
        %678 = vmatpush1.msra.mxu0 %v538
        %679 = vmatprep.subr.mxu0 0.0
        %680 = vmatpush1.msra.mxu0 %v537
        %681 = vmatprep.subr.mxu0 0.0
        %682 = vmatpush1.msra.mxu0 %v536
        %683 = vmatprep.subr.mxu0 0.0
        %684 = vmatpush1.msra.mxu0 %v535
        %685 = vmatprep.subr.mxu0 0.0
        %686 = vmatpush1.msra.mxu0 %v534
        %687 = vmatprep.subr.mxu0 0.0
        %688 = vmatpush1.msra.mxu0 %v533
        %689 = vmatprep.subr.mxu0 0.0
        %690 = vmatpush1.msra.mxu0 %v532
        %691 = vmatprep.subr.mxu0 0.0
        %692 = vmatpush1.msra.mxu0 %v531
        %693 = vmatprep.subr.mxu0 0.0
        %694 = vmatpush1.msra.mxu0 %v530
        %695 = vmatprep.subr.mxu0 0.0
        %696 = vmatpush1.msra.mxu0 %v529
        %697 = vmatprep.subr.mxu0 0.0
        %698 = vmatpush1.msra.mxu0 %v528
        %699 = vmatprep.subr.mxu0 0.0
        %700 = vmatpush1.msra.mxu0 %v527
        %701 = vmatprep.subr.mxu0 0.0
        %702 = vmatpush1.msra.mxu0 %v526
        %703 = vmatprep.subr.mxu0 0.0
        %704 = vmatpush2.msra.mxu0 0.0
        %705 = vmatprep.subr.mxu0 0.0
        %706 = vmatpush2.msra.mxu0 0.0
        %707 = vmatprep.subr.mxu0 0.0
        %708 = vmatpush2.msra.mxu0 0.0
        %709 = vmatprep.subr.mxu0 0.0
        %710 = vmatpush2.msra.mxu0 0.0
        %711 = vmatprep.subr.mxu0 0.0
        %712 = vmatpush2.msra.mxu0 0.0
        %713 = vmatprep.subr.mxu0 0.0
        %714 = vmatpush2.msra.mxu0 0.0
        %715 = vmatprep.subr.mxu0 0.0
        %716 = vmatpush2.msra.mxu0 0.0
        %717 = vmatprep.subr.mxu0 0.0
        %718 = vmatpush2.msra.mxu0 0.0
        %719 = vmatprep.subr.mxu0 0.0
        %720 = vmatpush2.msra.mxu0 0.0
        %721 = vmatprep.subr.mxu0 0.0
        %722 = vmatpush2.msra.mxu0 0.0
        %723 = vmatprep.subr.mxu0 0.0
        %724 = vmatpush2.msra.mxu0 0.0
        %725 = vmatprep.subr.mxu0 0.0
        %726 = vmatpush2.msra.mxu0 0.0
        %727 = vmatprep.subr.mxu0 0.0
        %728 = vmatpush2.msra.mxu0 0.0
        %729 = vmatprep.subr.mxu0 0.0
        %730 = vmatpush2.msra.mxu0 0.0
        %731 = vmatprep.subr.mxu0 0.0
        %732 = vmatpush2.msra.mxu0 0.0
        %733 = vmatprep.subr.mxu0 0.0
        %734 = vmatpush2.msra.mxu0 0.0
        %735 = vmatprep.mubr.f32.mxu0 0.0
        %736 = vmatmul.mubr.f32.gmra.mxu0 %v668
        %v737 = vpop.f32.mrf.mxu0
        %v738 = vadd.f32 0.0, %v737
        %v739 = vpop.f32.mrf.mxu0
        %740 = vdwg.mxu0
        %v741 = vrcp.pop %v670
        %v742 = vmul.f32 %v738, %v741
        %v743 = vld [vmem:[%s407] sm:$0xff]
        %v744 = vld [vmem:[%s407 + $0x8] sm:$0xff]
        %v745 = vld [vmem:[%s407 + $0x10] sm:$0xff]
        %v746 = vld [vmem:[%s407 + $0x18] sm:$0xff]
        %v747 = vld [vmem:[%s407 + $0x20] sm:$0xff]
        %v748 = vld [vmem:[%s407 + $0x28] sm:$0xff]
        %v749 = vld [vmem:[%s407 + $0x30] sm:$0xff]
        %v750 = vld [vmem:[%s407 + $0x38] sm:$0xff]
        %v751 = vld [vmem:[%s407 + $0x40] sm:$0xff]
        %v752 = vld [vmem:[%s407 + $0x48] sm:$0xff]
        %v753 = vld [vmem:[%s407 + $0x50] sm:$0xff]
        %v754 = vld [vmem:[%s407 + $0x58] sm:$0xff]
        %v755 = vld [vmem:[%s407 + $0x60] sm:$0xff]
        %v756 = vld [vmem:[%s407 + $0x68] sm:$0xff]
        %v757 = vld [vmem:[%s407 + $0x70] sm:$0xff]
        %v758 = vld [vmem:[%s407 + $0x78] sm:$0xff]
        %v759 = vld [vmem:[%s412] sm:$0xff]
        %v760 = vld [vmem:[%s412 + $0x8] sm:$0xff]
        %v761 = vld [vmem:[%s412 + $0x10] sm:$0xff]
        %v762 = vld [vmem:[%s412 + $0x18] sm:$0xff]
        %v763 = vld [vmem:[%s412 + $0x20] sm:$0xff]
        %v764 = vld [vmem:[%s412 + $0x28] sm:$0xff]
        %v765 = vld [vmem:[%s412 + $0x30] sm:$0xff]
        %v766 = vld [vmem:[%s412 + $0x38] sm:$0xff]
        %v767 = vld [vmem:[%s412 + $0x40] sm:$0xff]
        %v768 = vld [vmem:[%s412 + $0x48] sm:$0xff]
        %v769 = vld [vmem:[%s412 + $0x50] sm:$0xff]
        %v770 = vld [vmem:[%s412 + $0x58] sm:$0xff]
        %v771 = vld [vmem:[%s412 + $0x60] sm:$0xff]
        %v772 = vld [vmem:[%s412 + $0x68] sm:$0xff]
        %v773 = vld [vmem:[%s412 + $0x70] sm:$0xff]
        %v774 = vld [vmem:[%s412 + $0x78] sm:$0xff]
        %775 = vrot.lane.b32.xlu0 %v509, 120
        %v776 = vpop.permute.xlu0 %775
        %793 = vrot.lane.b32.xlu0 %v743, 120
        %v794 = vpop.permute.xlu0 %793
        %795 = vrot.lane.b32.xlu0 %v744, 120
        %v796 = vpop.permute.xlu0 %795
        %797 = vrot.lane.b32.xlu0 %v745, 120
        %v798 = vpop.permute.xlu0 %797
        %799 = vrot.lane.b32.xlu0 %v746, 120
        %v800 = vpop.permute.xlu0 %799
        %801 = vrot.lane.b32.xlu0 %v747, 120
        %v802 = vpop.permute.xlu0 %801
        %803 = vrot.lane.b32.xlu0 %v748, 120
        %v804 = vpop.permute.xlu0 %803
        %805 = vrot.lane.b32.xlu0 %v749, 120
        %v806 = vpop.permute.xlu0 %805
        %807 = vrot.lane.b32.xlu0 %v750, 120
        %v808 = vpop.permute.xlu0 %807
        %809 = vrot.lane.b32.xlu0 %v751, 120
        %v810 = vpop.permute.xlu0 %809
        %811 = vrot.lane.b32.xlu0 %v752, 120
        %v812 = vpop.permute.xlu0 %811
        %813 = vrot.lane.b32.xlu0 %v753, 120
        %v814 = vpop.permute.xlu0 %813
        %815 = vrot.lane.b32.xlu0 %v754, 120
        %v816 = vpop.permute.xlu0 %815
        %817 = vrot.lane.b32.xlu0 %v755, 120
        %v818 = vpop.permute.xlu0 %817
        %819 = vrot.lane.b32.xlu0 %v756, 120
        %v820 = vpop.permute.xlu0 %819
        %821 = vrot.lane.b32.xlu0 %v757, 120
        %v822 = vpop.permute.xlu0 %821
        %823 = vrot.lane.b32.xlu0 %v758, 120
        %v824 = vpop.permute.xlu0 %823
        %v825 = vsel %vm542, %v776, 0
        %v827 = vsel %vm542, %v794, 0
        %v829 = vsel %vm542, %v796, 0
        %v831 = vsel %vm542, %v798, 0
        %v833 = vsel %vm542, %v800, 0
        %v835 = vsel %vm542, %v802, 0
        %v837 = vsel %vm542, %v804, 0
        %v839 = vsel %vm542, %v806, 0
        %v841 = vsel %vm542, %v808, 0
        %v843 = vsel %vm542, %v810, 0
        %v845 = vsel %vm542, %v812, 0
        %v847 = vsel %vm542, %v814, 0
        %v849 = vsel %vm542, %v816, 0
        %v851 = vsel %vm542, %v818, 0
        %v853 = vsel %vm542, %v820, 0
        %v855 = vsel %vm542, %v822, 0
        %v857 = vsel %vm542, %v824, 0
        %859 = vmatprep.subr.mxu0 0.0
        %860 = vmatpush1.xpose.msra.mxu0 %v857
        %861 = vmatprep.subr.mxu0 0.0
        %862 = vmatpush1.xpose.msra.mxu0 %v855
        %863 = vmatprep.subr.mxu0 0.0
        %864 = vmatpush1.xpose.msra.mxu0 %v853
        %865 = vmatprep.subr.mxu0 0.0
        %866 = vmatpush1.xpose.msra.mxu0 %v851
        %867 = vmatprep.subr.mxu0 0.0
        %868 = vmatpush1.xpose.msra.mxu0 %v849
        %869 = vmatprep.subr.mxu0 0.0
        %870 = vmatpush1.xpose.msra.mxu0 %v847
        %871 = vmatprep.subr.mxu0 0.0
        %872 = vmatpush1.xpose.msra.mxu0 %v845
        %873 = vmatprep.subr.mxu0 0.0
        %874 = vmatpush1.xpose.msra.mxu0 %v843
        %875 = vmatprep.subr.mxu0 0.0
        %876 = vmatpush1.xpose.msra.mxu0 %v841
        %877 = vmatprep.subr.mxu0 0.0
        %878 = vmatpush1.xpose.msra.mxu0 %v839
        %879 = vmatprep.subr.mxu0 0.0
        %880 = vmatpush1.xpose.msra.mxu0 %v837
        %881 = vmatprep.subr.mxu0 0.0
        %882 = vmatpush1.xpose.msra.mxu0 %v835
        %883 = vmatprep.subr.mxu0 0.0
        %884 = vmatpush1.xpose.msra.mxu0 %v833
        %885 = vmatprep.subr.mxu0 0.0
        %886 = vmatpush1.xpose.msra.mxu0 %v831
        %887 = vmatprep.subr.mxu0 0.0
        %888 = vmatpush1.xpose.msra.mxu0 %v829
        %889 = vmatprep.subr.mxu0 0.0
        %890 = vmatpush1.xpose.msra.mxu0 %v827
        %891 = vmatprep.subr.mxu0 0.0
        %892 = vmatpush2.xpose.msra.mxu0 0.0
        %893 = vmatprep.subr.mxu0 0.0
        %894 = vmatpush2.xpose.msra.mxu0 0.0
        %895 = vmatprep.subr.mxu0 0.0
        %896 = vmatpush2.xpose.msra.mxu0 0.0
        %897 = vmatprep.subr.mxu0 0.0
        %898 = vmatpush2.xpose.msra.mxu0 0.0
        %899 = vmatprep.subr.mxu0 0.0
        %900 = vmatpush2.xpose.msra.mxu0 0.0
        %901 = vmatprep.subr.mxu0 0.0
        %902 = vmatpush2.xpose.msra.mxu0 0.0
        %903 = vmatprep.subr.mxu0 0.0
        %904 = vmatpush2.xpose.msra.mxu0 0.0
        %905 = vmatprep.subr.mxu0 0.0
        %906 = vmatpush2.xpose.msra.mxu0 0.0
        %907 = vmatprep.subr.mxu0 0.0
        %908 = vmatpush2.xpose.msra.mxu0 0.0
        %909 = vmatprep.subr.mxu0 0.0
        %910 = vmatpush2.xpose.msra.mxu0 0.0
        %911 = vmatprep.subr.mxu0 0.0
        %912 = vmatpush2.xpose.msra.mxu0 0.0
        %913 = vmatprep.subr.mxu0 0.0
        %914 = vmatpush2.xpose.msra.mxu0 0.0
        %915 = vmatprep.subr.mxu0 0.0
        %916 = vmatpush2.xpose.msra.mxu0 0.0
        %917 = vmatprep.subr.mxu0 0.0
        %918 = vmatpush2.xpose.msra.mxu0 0.0
        %919 = vmatprep.subr.mxu0 0.0
        %920 = vmatpush2.xpose.msra.mxu0 0.0
        %921 = vmatprep.subr.mxu0 0.0
        %922 = vmatpush2.xpose.msra.mxu0 0.0
        %923 = vmatprep.mubr.f32.mxu0 0.0
        %924 = vmatmul.mubr.f32.gmra.mxu0 %v825
        %v925 = vpop.f32.mrf.mxu0
        %v926 = vadd.f32 %v424, %v925
        %v927 = vpop.f32.mrf.mxu0
        %928 = vdwg.mxu0
        %929 = vmax.xlane.f32.xlu0 %v926
        %v930 = vpop.xlane.xlu0 %929
        %v931 = vsub.f32 %v926, %v930
        %v932 = vmul.f32 %v931, 1.442695
        %v933 = vpow.pop %v932
        %934 = vadd.xlane.f32.xlu0 %v933
        %v935 = vpop.xlane.xlu0 %934
        %952 = vrot.lane.b32.xlu0 %v759, 120
        %v953 = vpop.permute.xlu0 %952
        %954 = vrot.lane.b32.xlu0 %v760, 120
        %v955 = vpop.permute.xlu0 %954
        %956 = vrot.lane.b32.xlu0 %v761, 120
        %v957 = vpop.permute.xlu0 %956
        %958 = vrot.lane.b32.xlu0 %v762, 120
        %v959 = vpop.permute.xlu0 %958
        %960 = vrot.lane.b32.xlu0 %v763, 120
        %v961 = vpop.permute.xlu0 %960
        %962 = vrot.lane.b32.xlu0 %v764, 120
        %v963 = vpop.permute.xlu0 %962
        %964 = vrot.lane.b32.xlu0 %v765, 120
        %v965 = vpop.permute.xlu0 %964
        %966 = vrot.lane.b32.xlu0 %v766, 120
        %v967 = vpop.permute.xlu0 %966
        %968 = vrot.lane.b32.xlu0 %v767, 120
        %v969 = vpop.permute.xlu0 %968
        %970 = vrot.lane.b32.xlu0 %v768, 120
        %v971 = vpop.permute.xlu0 %970
        %972 = vrot.lane.b32.xlu0 %v769, 120
        %v973 = vpop.permute.xlu0 %972
        %974 = vrot.lane.b32.xlu0 %v770, 120
        %v975 = vpop.permute.xlu0 %974
        %976 = vrot.lane.b32.xlu0 %v771, 120
        %v977 = vpop.permute.xlu0 %976
        %978 = vrot.lane.b32.xlu0 %v772, 120
        %v979 = vpop.permute.xlu0 %978
        %980 = vrot.lane.b32.xlu0 %v773, 120
        %v981 = vpop.permute.xlu0 %980
        %982 = vrot.lane.b32.xlu0 %v774, 120
        %v983 = vpop.permute.xlu0 %982
        %1000 = vmatprep.subr.mxu0 0.0
        %1001 = vmatpush1.msra.mxu0 %v983
        %1002 = vmatprep.subr.mxu0 0.0
        %1003 = vmatpush1.msra.mxu0 %v981
        %1004 = vmatprep.subr.mxu0 0.0
        %1005 = vmatpush1.msra.mxu0 %v979
        %1006 = vmatprep.subr.mxu0 0.0
        %1007 = vmatpush1.msra.mxu0 %v977
        %1008 = vmatprep.subr.mxu0 0.0
        %1009 = vmatpush1.msra.mxu0 %v975
        %1010 = vmatprep.subr.mxu0 0.0
        %1011 = vmatpush1.msra.mxu0 %v973
        %1012 = vmatprep.subr.mxu0 0.0
        %1013 = vmatpush1.msra.mxu0 %v971
        %1014 = vmatprep.subr.mxu0 0.0
        %1015 = vmatpush1.msra.mxu0 %v969
        %1016 = vmatprep.subr.mxu0 0.0
        %1017 = vmatpush1.msra.mxu0 %v967
        %1018 = vmatprep.subr.mxu0 0.0
        %1019 = vmatpush1.msra.mxu0 %v965
        %1020 = vmatprep.subr.mxu0 0.0
        %1021 = vmatpush1.msra.mxu0 %v963
        %1022 = vmatprep.subr.mxu0 0.0
        %1023 = vmatpush1.msra.mxu0 %v961
        %1024 = vmatprep.subr.mxu0 0.0
        %1025 = vmatpush1.msra.mxu0 %v959
        %1026 = vmatprep.subr.mxu0 0.0
        %1027 = vmatpush1.msra.mxu0 %v957
        %1028 = vmatprep.subr.mxu0 0.0
        %1029 = vmatpush1.msra.mxu0 %v955
        %1030 = vmatprep.subr.mxu0 0.0
        %1031 = vmatpush1.msra.mxu0 %v953
        %1032 = vmatprep.subr.mxu0 0.0
        %1033 = vmatpush2.msra.mxu0 0.0
        %1034 = vmatprep.subr.mxu0 0.0
        %1035 = vmatpush2.msra.mxu0 0.0
        %1036 = vmatprep.subr.mxu0 0.0
        %1037 = vmatpush2.msra.mxu0 0.0
        %1038 = vmatprep.subr.mxu0 0.0
        %1039 = vmatpush2.msra.mxu0 0.0
        %1040 = vmatprep.subr.mxu0 0.0
        %1041 = vmatpush2.msra.mxu0 0.0
        %1042 = vmatprep.subr.mxu0 0.0
        %1043 = vmatpush2.msra.mxu0 0.0
        %1044 = vmatprep.subr.mxu0 0.0
        %1045 = vmatpush2.msra.mxu0 0.0
        %1046 = vmatprep.subr.mxu0 0.0
        %1047 = vmatpush2.msra.mxu0 0.0
        %1048 = vmatprep.subr.mxu0 0.0
        %1049 = vmatpush2.msra.mxu0 0.0
        %1050 = vmatprep.subr.mxu0 0.0
        %1051 = vmatpush2.msra.mxu0 0.0
        %1052 = vmatprep.subr.mxu0 0.0
        %1053 = vmatpush2.msra.mxu0 0.0
        %1054 = vmatprep.subr.mxu0 0.0
        %1055 = vmatpush2.msra.mxu0 0.0
        %1056 = vmatprep.subr.mxu0 0.0
        %1057 = vmatpush2.msra.mxu0 0.0
        %1058 = vmatprep.subr.mxu0 0.0
        %1059 = vmatpush2.msra.mxu0 0.0
        %1060 = vmatprep.subr.mxu0 0.0
        %1061 = vmatpush2.msra.mxu0 0.0
        %1062 = vmatprep.subr.mxu0 0.0
        %1063 = vmatpush2.msra.mxu0 0.0
        %1064 = vmatprep.mubr.f32.mxu0 0.0
        %1065 = vmatmul.mubr.f32.gmra.mxu0 %v933
        %v1066 = vpop.f32.mrf.mxu0
        %v1067 = vadd.f32 0.0, %v1066
        %v1068 = vpop.f32.mrf.mxu0
        %1069 = vdwg.mxu0
        %v1070 = vrcp.pop %v935
        %v1071 = vmul.f32 %v1067, %v1070
        %v1072 = vld [vmem:[%s407] sm:$0xff]
        %v1073 = vld [vmem:[%s407 + $0x8] sm:$0xff]
        %v1074 = vld [vmem:[%s407 + $0x10] sm:$0xff]
        %v1075 = vld [vmem:[%s407 + $0x18] sm:$0xff]
        %v1076 = vld [vmem:[%s407 + $0x20] sm:$0xff]
        %v1077 = vld [vmem:[%s407 + $0x28] sm:$0xff]
        %v1078 = vld [vmem:[%s407 + $0x30] sm:$0xff]
        %v1079 = vld [vmem:[%s407 + $0x38] sm:$0xff]
        %v1080 = vld [vmem:[%s407 + $0x40] sm:$0xff]
        %v1081 = vld [vmem:[%s407 + $0x48] sm:$0xff]
        %v1082 = vld [vmem:[%s407 + $0x50] sm:$0xff]
        %v1083 = vld [vmem:[%s407 + $0x58] sm:$0xff]
        %v1084 = vld [vmem:[%s407 + $0x60] sm:$0xff]
        %v1085 = vld [vmem:[%s407 + $0x68] sm:$0xff]
        %v1086 = vld [vmem:[%s407 + $0x70] sm:$0xff]
        %v1087 = vld [vmem:[%s407 + $0x78] sm:$0xff]
        %v1088 = vld [vmem:[%s412] sm:$0xff]
        %v1089 = vld [vmem:[%s412 + $0x8] sm:$0xff]
        %v1090 = vld [vmem:[%s412 + $0x10] sm:$0xff]
        %v1091 = vld [vmem:[%s412 + $0x18] sm:$0xff]
        %v1092 = vld [vmem:[%s412 + $0x20] sm:$0xff]
        %v1093 = vld [vmem:[%s412 + $0x28] sm:$0xff]
        %v1094 = vld [vmem:[%s412 + $0x30] sm:$0xff]
        %v1095 = vld [vmem:[%s412 + $0x38] sm:$0xff]
        %v1096 = vld [vmem:[%s412 + $0x40] sm:$0xff]
        %v1097 = vld [vmem:[%s412 + $0x48] sm:$0xff]
        %v1098 = vld [vmem:[%s412 + $0x50] sm:$0xff]
        %v1099 = vld [vmem:[%s412 + $0x58] sm:$0xff]
        %v1100 = vld [vmem:[%s412 + $0x60] sm:$0xff]
        %v1101 = vld [vmem:[%s412 + $0x68] sm:$0xff]
        %v1102 = vld [vmem:[%s412 + $0x70] sm:$0xff]
        %v1103 = vld [vmem:[%s412 + $0x78] sm:$0xff]
        %1104 = vrot.lane.b32.xlu0 %v509, 112
        %v1105 = vpop.permute.xlu0 %1104
        %1122 = vrot.lane.b32.xlu0 %v1072, 112
        %v1123 = vpop.permute.xlu0 %1122
        %1124 = vrot.lane.b32.xlu0 %v1073, 112
        %v1125 = vpop.permute.xlu0 %1124
        %1126 = vrot.lane.b32.xlu0 %v1074, 112
        %v1127 = vpop.permute.xlu0 %1126
        %1128 = vrot.lane.b32.xlu0 %v1075, 112
        %v1129 = vpop.permute.xlu0 %1128
        %1130 = vrot.lane.b32.xlu0 %v1076, 112
        %v1131 = vpop.permute.xlu0 %1130
        %1132 = vrot.lane.b32.xlu0 %v1077, 112
        %v1133 = vpop.permute.xlu0 %1132
        %1134 = vrot.lane.b32.xlu0 %v1078, 112
        %v1135 = vpop.permute.xlu0 %1134
        %1136 = vrot.lane.b32.xlu0 %v1079, 112
        %v1137 = vpop.permute.xlu0 %1136
        %1138 = vrot.lane.b32.xlu0 %v1080, 112
        %v1139 = vpop.permute.xlu0 %1138
        %1140 = vrot.lane.b32.xlu0 %v1081, 112
        %v1141 = vpop.permute.xlu0 %1140
        %1142 = vrot.lane.b32.xlu0 %v1082, 112
        %v1143 = vpop.permute.xlu0 %1142
        %1144 = vrot.lane.b32.xlu0 %v1083, 112
        %v1145 = vpop.permute.xlu0 %1144
        %1146 = vrot.lane.b32.xlu0 %v1084, 112
        %v1147 = vpop.permute.xlu0 %1146
        %1148 = vrot.lane.b32.xlu0 %v1085, 112
        %v1149 = vpop.permute.xlu0 %1148
        %1150 = vrot.lane.b32.xlu0 %v1086, 112
        %v1151 = vpop.permute.xlu0 %1150
        %1152 = vrot.lane.b32.xlu0 %v1087, 112
        %v1153 = vpop.permute.xlu0 %1152
        %v1154 = vsel %vm542, %v1105, 0
        %v1156 = vsel %vm542, %v1123, 0
        %v1158 = vsel %vm542, %v1125, 0
        %v1160 = vsel %vm542, %v1127, 0
        %v1162 = vsel %vm542, %v1129, 0
        %v1164 = vsel %vm542, %v1131, 0
        %v1166 = vsel %vm542, %v1133, 0
        %v1168 = vsel %vm542, %v1135, 0
        %v1170 = vsel %vm542, %v1137, 0
        %v1172 = vsel %vm542, %v1139, 0
        %v1174 = vsel %vm542, %v1141, 0
        %v1176 = vsel %vm542, %v1143, 0
        %v1178 = vsel %vm542, %v1145, 0
        %v1180 = vsel %vm542, %v1147, 0
        %v1182 = vsel %vm542, %v1149, 0
        %v1184 = vsel %vm542, %v1151, 0
        %v1186 = vsel %vm542, %v1153, 0
        %1188 = vmatprep.subr.mxu0 0.0
        %1189 = vmatpush1.xpose.msra.mxu0 %v1186
        %1190 = vmatprep.subr.mxu0 0.0
        %1191 = vmatpush1.xpose.msra.mxu0 %v1184
        %1192 = vmatprep.subr.mxu0 0.0
        %1193 = vmatpush1.xpose.msra.mxu0 %v1182
        %1194 = vmatprep.subr.mxu0 0.0
        %1195 = vmatpush1.xpose.msra.mxu0 %v1180
        %1196 = vmatprep.subr.mxu0 0.0
        %1197 = vmatpush1.xpose.msra.mxu0 %v1178
        %1198 = vmatprep.subr.mxu0 0.0
        %1199 = vmatpush1.xpose.msra.mxu0 %v1176
        %1200 = vmatprep.subr.mxu0 0.0
        %1201 = vmatpush1.xpose.msra.mxu0 %v1174
        %1202 = vmatprep.subr.mxu0 0.0
        %1203 = vmatpush1.xpose.msra.mxu0 %v1172
        %1204 = vmatprep.subr.mxu0 0.0
        %1205 = vmatpush1.xpose.msra.mxu0 %v1170
        %1206 = vmatprep.subr.mxu0 0.0
        %1207 = vmatpush1.xpose.msra.mxu0 %v1168
        %1208 = vmatprep.subr.mxu0 0.0
        %1209 = vmatpush1.xpose.msra.mxu0 %v1166
        %1210 = vmatprep.subr.mxu0 0.0
        %1211 = vmatpush1.xpose.msra.mxu0 %v1164
        %1212 = vmatprep.subr.mxu0 0.0
        %1213 = vmatpush1.xpose.msra.mxu0 %v1162
        %1214 = vmatprep.subr.mxu0 0.0
        %1215 = vmatpush1.xpose.msra.mxu0 %v1160
        %1216 = vmatprep.subr.mxu0 0.0
        %1217 = vmatpush1.xpose.msra.mxu0 %v1158
        %1218 = vmatprep.subr.mxu0 0.0
        %1219 = vmatpush1.xpose.msra.mxu0 %v1156
        %1220 = vmatprep.subr.mxu0 0.0
        %1221 = vmatpush2.xpose.msra.mxu0 0.0
        %1222 = vmatprep.subr.mxu0 0.0
        %1223 = vmatpush2.xpose.msra.mxu0 0.0
        %1224 = vmatprep.subr.mxu0 0.0
        %1225 = vmatpush2.xpose.msra.mxu0 0.0
        %1226 = vmatprep.subr.mxu0 0.0
        %1227 = vmatpush2.xpose.msra.mxu0 0.0
        %1228 = vmatprep.subr.mxu0 0.0
        %1229 = vmatpush2.xpose.msra.mxu0 0.0
        %1230 = vmatprep.subr.mxu0 0.0
        %1231 = vmatpush2.xpose.msra.mxu0 0.0
        %1232 = vmatprep.subr.mxu0 0.0
        %1233 = vmatpush2.xpose.msra.mxu0 0.0
        %1234 = vmatprep.subr.mxu0 0.0
        %1235 = vmatpush2.xpose.msra.mxu0 0.0
        %1236 = vmatprep.subr.mxu0 0.0
        %1237 = vmatpush2.xpose.msra.mxu0 0.0
        %1238 = vmatprep.subr.mxu0 0.0
        %1239 = vmatpush2.xpose.msra.mxu0 0.0
        %1240 = vmatprep.subr.mxu0 0.0
        %1241 = vmatpush2.xpose.msra.mxu0 0.0
        %1242 = vmatprep.subr.mxu0 0.0
        %1243 = vmatpush2.xpose.msra.mxu0 0.0
        %1244 = vmatprep.subr.mxu0 0.0
        %1245 = vmatpush2.xpose.msra.mxu0 0.0
        %1246 = vmatprep.subr.mxu0 0.0
        %1247 = vmatpush2.xpose.msra.mxu0 0.0
        %1248 = vmatprep.subr.mxu0 0.0
        %1249 = vmatpush2.xpose.msra.mxu0 0.0
        %1250 = vmatprep.subr.mxu0 0.0
        %1251 = vmatpush2.xpose.msra.mxu0 0.0
        %1252 = vmatprep.mubr.f32.mxu0 0.0
        %1253 = vmatmul.mubr.f32.gmra.mxu0 %v1154
        %v1254 = vpop.f32.mrf.mxu0
        %v1255 = vadd.f32 %v424, %v1254
        %v1256 = vpop.f32.mrf.mxu0
        %1257 = vdwg.mxu0
        %1258 = vmax.xlane.f32.xlu0 %v1255
        %v1259 = vpop.xlane.xlu0 %1258
        %v1260 = vsub.f32 %v1255, %v1259
        %v1261 = vmul.f32 %v1260, 1.442695
        %v1262 = vpow.pop %v1261
        %1263 = vadd.xlane.f32.xlu0 %v1262
        %v1264 = vpop.xlane.xlu0 %1263
        %1281 = vrot.lane.b32.xlu0 %v1088, 112
        %v1282 = vpop.permute.xlu0 %1281
        %1283 = vrot.lane.b32.xlu0 %v1089, 112
        %v1284 = vpop.permute.xlu0 %1283
        %1285 = vrot.lane.b32.xlu0 %v1090, 112
        %v1286 = vpop.permute.xlu0 %1285
        %1287 = vrot.lane.b32.xlu0 %v1091, 112
        %v1288 = vpop.permute.xlu0 %1287
        %1289 = vrot.lane.b32.xlu0 %v1092, 112
        %v1290 = vpop.permute.xlu0 %1289
        %1291 = vrot.lane.b32.xlu0 %v1093, 112
        %v1292 = vpop.permute.xlu0 %1291
        %1293 = vrot.lane.b32.xlu0 %v1094, 112
        %v1294 = vpop.permute.xlu0 %1293
        %1295 = vrot.lane.b32.xlu0 %v1095, 112
        %v1296 = vpop.permute.xlu0 %1295
        %1297 = vrot.lane.b32.xlu0 %v1096, 112
        %v1298 = vpop.permute.xlu0 %1297
        %1299 = vrot.lane.b32.xlu0 %v1097, 112
        %v1300 = vpop.permute.xlu0 %1299
        %1301 = vrot.lane.b32.xlu0 %v1098, 112
        %v1302 = vpop.permute.xlu0 %1301
        %1303 = vrot.lane.b32.xlu0 %v1099, 112
        %v1304 = vpop.permute.xlu0 %1303
        %1305 = vrot.lane.b32.xlu0 %v1100, 112
        %v1306 = vpop.permute.xlu0 %1305
        %1307 = vrot.lane.b32.xlu0 %v1101, 112
        %v1308 = vpop.permute.xlu0 %1307
        %1309 = vrot.lane.b32.xlu0 %v1102, 112
        %v1310 = vpop.permute.xlu0 %1309
        %1311 = vrot.lane.b32.xlu0 %v1103, 112
        %v1312 = vpop.permute.xlu0 %1311
        %1329 = vmatprep.subr.mxu0 0.0
        %1330 = vmatpush1.msra.mxu0 %v1312
        %1331 = vmatprep.subr.mxu0 0.0
        %1332 = vmatpush1.msra.mxu0 %v1310
        %1333 = vmatprep.subr.mxu0 0.0
        %1334 = vmatpush1.msra.mxu0 %v1308
        %1335 = vmatprep.subr.mxu0 0.0
        %1336 = vmatpush1.msra.mxu0 %v1306
        %1337 = vmatprep.subr.mxu0 0.0
        %1338 = vmatpush1.msra.mxu0 %v1304
        %1339 = vmatprep.subr.mxu0 0.0
        %1340 = vmatpush1.msra.mxu0 %v1302
        %1341 = vmatprep.subr.mxu0 0.0
        %1342 = vmatpush1.msra.mxu0 %v1300
        %1343 = vmatprep.subr.mxu0 0.0
        %1344 = vmatpush1.msra.mxu0 %v1298
        %1345 = vmatprep.subr.mxu0 0.0
        %1346 = vmatpush1.msra.mxu0 %v1296
        %1347 = vmatprep.subr.mxu0 0.0
        %1348 = vmatpush1.msra.mxu0 %v1294
        %1349 = vmatprep.subr.mxu0 0.0
        %1350 = vmatpush1.msra.mxu0 %v1292
        %1351 = vmatprep.subr.mxu0 0.0
        %1352 = vmatpush1.msra.mxu0 %v1290
        %1353 = vmatprep.subr.mxu0 0.0
        %1354 = vmatpush1.msra.mxu0 %v1288
        %1355 = vmatprep.subr.mxu0 0.0
        %1356 = vmatpush1.msra.mxu0 %v1286
        %1357 = vmatprep.subr.mxu0 0.0
        %1358 = vmatpush1.msra.mxu0 %v1284
        %1359 = vmatprep.subr.mxu0 0.0
        %1360 = vmatpush1.msra.mxu0 %v1282
        %1361 = vmatprep.subr.mxu0 0.0
        %1362 = vmatpush2.msra.mxu0 0.0
        %1363 = vmatprep.subr.mxu0 0.0
        %1364 = vmatpush2.msra.mxu0 0.0
        %1365 = vmatprep.subr.mxu0 0.0
        %1366 = vmatpush2.msra.mxu0 0.0
        %1367 = vmatprep.subr.mxu0 0.0
        %1368 = vmatpush2.msra.mxu0 0.0
        %1369 = vmatprep.subr.mxu0 0.0
        %1370 = vmatpush2.msra.mxu0 0.0
        %1371 = vmatprep.subr.mxu0 0.0
        %1372 = vmatpush2.msra.mxu0 0.0
        %1373 = vmatprep.subr.mxu0 0.0
        %1374 = vmatpush2.msra.mxu0 0.0
        %1375 = vmatprep.subr.mxu0 0.0
        %1376 = vmatpush2.msra.mxu0 0.0
        %1377 = vmatprep.subr.mxu0 0.0
        %1378 = vmatpush2.msra.mxu0 0.0
        %1379 = vmatprep.subr.mxu0 0.0
        %1380 = vmatpush2.msra.mxu0 0.0
        %1381 = vmatprep.subr.mxu0 0.0
        %1382 = vmatpush2.msra.mxu0 0.0
        %1383 = vmatprep.subr.mxu0 0.0
        %1384 = vmatpush2.msra.mxu0 0.0
        %1385 = vmatprep.subr.mxu0 0.0
        %1386 = vmatpush2.msra.mxu0 0.0
        %1387 = vmatprep.subr.mxu0 0.0
        %1388 = vmatpush2.msra.mxu0 0.0
        %1389 = vmatprep.subr.mxu0 0.0
        %1390 = vmatpush2.msra.mxu0 0.0
        %1391 = vmatprep.subr.mxu0 0.0
        %1392 = vmatpush2.msra.mxu0 0.0
        %1393 = vmatprep.mubr.f32.mxu0 0.0
        %1394 = vmatmul.mubr.f32.gmra.mxu0 %v1262
        %v1395 = vpop.f32.mrf.mxu0
        %v1396 = vadd.f32 0.0, %v1395
        %v1397 = vpop.f32.mrf.mxu0
        %1398 = vdwg.mxu0
        %v1399 = vrcp.pop %v1264
        %v1400 = vmul.f32 %v1396, %v1399
        %v1401 = vld [vmem:[%s407] sm:$0xff]
        %v1402 = vld [vmem:[%s407 + $0x8] sm:$0xff]
        %v1403 = vld [vmem:[%s407 + $0x10] sm:$0xff]
        %v1404 = vld [vmem:[%s407 + $0x18] sm:$0xff]
        %v1405 = vld [vmem:[%s407 + $0x20] sm:$0xff]
        %v1406 = vld [vmem:[%s407 + $0x28] sm:$0xff]
        %v1407 = vld [vmem:[%s407 + $0x30] sm:$0xff]
        %v1408 = vld [vmem:[%s407 + $0x38] sm:$0xff]
        %v1409 = vld [vmem:[%s407 + $0x40] sm:$0xff]
        %v1410 = vld [vmem:[%s407 + $0x48] sm:$0xff]
        %v1411 = vld [vmem:[%s407 + $0x50] sm:$0xff]
        %v1412 = vld [vmem:[%s407 + $0x58] sm:$0xff]
        %v1413 = vld [vmem:[%s407 + $0x60] sm:$0xff]
        %v1414 = vld [vmem:[%s407 + $0x68] sm:$0xff]
        %v1415 = vld [vmem:[%s407 + $0x70] sm:$0xff]
        %v1416 = vld [vmem:[%s407 + $0x78] sm:$0xff]
        %v1417 = vld [vmem:[%s412] sm:$0xff]
        %v1418 = vld [vmem:[%s412 + $0x8] sm:$0xff]
        %v1419 = vld [vmem:[%s412 + $0x10] sm:$0xff]
        %v1420 = vld [vmem:[%s412 + $0x18] sm:$0xff]
        %v1421 = vld [vmem:[%s412 + $0x20] sm:$0xff]
        %v1422 = vld [vmem:[%s412 + $0x28] sm:$0xff]
        %v1423 = vld [vmem:[%s412 + $0x30] sm:$0xff]
        %v1424 = vld [vmem:[%s412 + $0x38] sm:$0xff]
        %v1425 = vld [vmem:[%s412 + $0x40] sm:$0xff]
        %v1426 = vld [vmem:[%s412 + $0x48] sm:$0xff]
        %v1427 = vld [vmem:[%s412 + $0x50] sm:$0xff]
        %v1428 = vld [vmem:[%s412 + $0x58] sm:$0xff]
        %v1429 = vld [vmem:[%s412 + $0x60] sm:$0xff]
        %v1430 = vld [vmem:[%s412 + $0x68] sm:$0xff]
        %v1431 = vld [vmem:[%s412 + $0x70] sm:$0xff]
        %v1432 = vld [vmem:[%s412 + $0x78] sm:$0xff]
        %1433 = vrot.lane.b32.xlu0 %v509, 104
        %v1434 = vpop.permute.xlu0 %1433
        %1451 = vrot.lane.b32.xlu0 %v1401, 104
        %v1452 = vpop.permute.xlu0 %1451
        %1453 = vrot.lane.b32.xlu0 %v1402, 104
        %v1454 = vpop.permute.xlu0 %1453
        %1455 = vrot.lane.b32.xlu0 %v1403, 104
        %v1456 = vpop.permute.xlu0 %1455
        %1457 = vrot.lane.b32.xlu0 %v1404, 104
        %v1458 = vpop.permute.xlu0 %1457
        %1459 = vrot.lane.b32.xlu0 %v1405, 104
        %v1460 = vpop.permute.xlu0 %1459
        %1461 = vrot.lane.b32.xlu0 %v1406, 104
        %v1462 = vpop.permute.xlu0 %1461
        %1463 = vrot.lane.b32.xlu0 %v1407, 104
        %v1464 = vpop.permute.xlu0 %1463
        %1465 = vrot.lane.b32.xlu0 %v1408, 104
        %v1466 = vpop.permute.xlu0 %1465
        %1467 = vrot.lane.b32.xlu0 %v1409, 104
        %v1468 = vpop.permute.xlu0 %1467
        %1469 = vrot.lane.b32.xlu0 %v1410, 104
        %v1470 = vpop.permute.xlu0 %1469
        %1471 = vrot.lane.b32.xlu0 %v1411, 104
        %v1472 = vpop.permute.xlu0 %1471
        %1473 = vrot.lane.b32.xlu0 %v1412, 104
        %v1474 = vpop.permute.xlu0 %1473
        %1475 = vrot.lane.b32.xlu0 %v1413, 104
        %v1476 = vpop.permute.xlu0 %1475
        %1477 = vrot.lane.b32.xlu0 %v1414, 104
        %v1478 = vpop.permute.xlu0 %1477
        %1479 = vrot.lane.b32.xlu0 %v1415, 104
        %v1480 = vpop.permute.xlu0 %1479
        %1481 = vrot.lane.b32.xlu0 %v1416, 104
        %v1482 = vpop.permute.xlu0 %1481
        %v1483 = vsel %vm542, %v1434, 0
        %v1485 = vsel %vm542, %v1452, 0
        %v1487 = vsel %vm542, %v1454, 0
        %v1489 = vsel %vm542, %v1456, 0
        %v1491 = vsel %vm542, %v1458, 0
        %v1493 = vsel %vm542, %v1460, 0
        %v1495 = vsel %vm542, %v1462, 0
        %v1497 = vsel %vm542, %v1464, 0
        %v1499 = vsel %vm542, %v1466, 0
        %v1501 = vsel %vm542, %v1468, 0
        %v1503 = vsel %vm542, %v1470, 0
        %v1505 = vsel %vm542, %v1472, 0
        %v1507 = vsel %vm542, %v1474, 0
        %v1509 = vsel %vm542, %v1476, 0
        %v1511 = vsel %vm542, %v1478, 0
        %v1513 = vsel %vm542, %v1480, 0
        %v1515 = vsel %vm542, %v1482, 0
        %1517 = vmatprep.subr.mxu0 0.0
        %1518 = vmatpush1.xpose.msra.mxu0 %v1515
        %1519 = vmatprep.subr.mxu0 0.0
        %1520 = vmatpush1.xpose.msra.mxu0 %v1513
        %1521 = vmatprep.subr.mxu0 0.0
        %1522 = vmatpush1.xpose.msra.mxu0 %v1511
        %1523 = vmatprep.subr.mxu0 0.0
        %1524 = vmatpush1.xpose.msra.mxu0 %v1509
        %1525 = vmatprep.subr.mxu0 0.0
        %1526 = vmatpush1.xpose.msra.mxu0 %v1507
        %1527 = vmatprep.subr.mxu0 0.0
        %1528 = vmatpush1.xpose.msra.mxu0 %v1505
        %1529 = vmatprep.subr.mxu0 0.0
        %1530 = vmatpush1.xpose.msra.mxu0 %v1503
        %1531 = vmatprep.subr.mxu0 0.0
        %1532 = vmatpush1.xpose.msra.mxu0 %v1501
        %1533 = vmatprep.subr.mxu0 0.0
        %1534 = vmatpush1.xpose.msra.mxu0 %v1499
        %1535 = vmatprep.subr.mxu0 0.0
        %1536 = vmatpush1.xpose.msra.mxu0 %v1497
        %1537 = vmatprep.subr.mxu0 0.0
        %1538 = vmatpush1.xpose.msra.mxu0 %v1495
        %1539 = vmatprep.subr.mxu0 0.0
        %1540 = vmatpush1.xpose.msra.mxu0 %v1493
        %1541 = vmatprep.subr.mxu0 0.0
        %1542 = vmatpush1.xpose.msra.mxu0 %v1491
        %1543 = vmatprep.subr.mxu0 0.0
        %1544 = vmatpush1.xpose.msra.mxu0 %v1489
        %1545 = vmatprep.subr.mxu0 0.0
        %1546 = vmatpush1.xpose.msra.mxu0 %v1487
        %1547 = vmatprep.subr.mxu0 0.0
        %1548 = vmatpush1.xpose.msra.mxu0 %v1485
        %1549 = vmatprep.subr.mxu0 0.0
        %1550 = vmatpush2.xpose.msra.mxu0 0.0
        %1551 = vmatprep.subr.mxu0 0.0
        %1552 = vmatpush2.xpose.msra.mxu0 0.0
        %1553 = vmatprep.subr.mxu0 0.0
        %1554 = vmatpush2.xpose.msra.mxu0 0.0
        %1555 = vmatprep.subr.mxu0 0.0
        %1556 = vmatpush2.xpose.msra.mxu0 0.0
        %1557 = vmatprep.subr.mxu0 0.0
        %1558 = vmatpush2.xpose.msra.mxu0 0.0
        %1559 = vmatprep.subr.mxu0 0.0
        %1560 = vmatpush2.xpose.msra.mxu0 0.0
        %1561 = vmatprep.subr.mxu0 0.0
        %1562 = vmatpush2.xpose.msra.mxu0 0.0
        %1563 = vmatprep.subr.mxu0 0.0
        %1564 = vmatpush2.xpose.msra.mxu0 0.0
        %1565 = vmatprep.subr.mxu0 0.0
        %1566 = vmatpush2.xpose.msra.mxu0 0.0
        %1567 = vmatprep.subr.mxu0 0.0
        %1568 = vmatpush2.xpose.msra.mxu0 0.0
        %1569 = vmatprep.subr.mxu0 0.0
        %1570 = vmatpush2.xpose.msra.mxu0 0.0
        %1571 = vmatprep.subr.mxu0 0.0
        %1572 = vmatpush2.xpose.msra.mxu0 0.0
        %1573 = vmatprep.subr.mxu0 0.0
        %1574 = vmatpush2.xpose.msra.mxu0 0.0
        %1575 = vmatprep.subr.mxu0 0.0
        %1576 = vmatpush2.xpose.msra.mxu0 0.0
        %1577 = vmatprep.subr.mxu0 0.0
        %1578 = vmatpush2.xpose.msra.mxu0 0.0
        %1579 = vmatprep.subr.mxu0 0.0
        %1580 = vmatpush2.xpose.msra.mxu0 0.0
        %1581 = vmatprep.mubr.f32.mxu0 0.0
        %1582 = vmatmul.mubr.f32.gmra.mxu0 %v1483
        %v1583 = vpop.f32.mrf.mxu0
        %v1584 = vadd.f32 %v424, %v1583
        %v1585 = vpop.f32.mrf.mxu0
        %1586 = vdwg.mxu0
        %1587 = vmax.xlane.f32.xlu0 %v1584
        %v1588 = vpop.xlane.xlu0 %1587
        %v1589 = vsub.f32 %v1584, %v1588
        %v1590 = vmul.f32 %v1589, 1.442695
        %v1591 = vpow.pop %v1590
        %1592 = vadd.xlane.f32.xlu0 %v1591
        %v1593 = vpop.xlane.xlu0 %1592
        %1610 = vrot.lane.b32.xlu0 %v1417, 104
        %v1611 = vpop.permute.xlu0 %1610
        %1612 = vrot.lane.b32.xlu0 %v1418, 104
        %v1613 = vpop.permute.xlu0 %1612
        %1614 = vrot.lane.b32.xlu0 %v1419, 104
        %v1615 = vpop.permute.xlu0 %1614
        %1616 = vrot.lane.b32.xlu0 %v1420, 104
        %v1617 = vpop.permute.xlu0 %1616
        %1618 = vrot.lane.b32.xlu0 %v1421, 104
        %v1619 = vpop.permute.xlu0 %1618
        %1620 = vrot.lane.b32.xlu0 %v1422, 104
        %v1621 = vpop.permute.xlu0 %1620
        %1622 = vrot.lane.b32.xlu0 %v1423, 104
        %v1623 = vpop.permute.xlu0 %1622
        %1624 = vrot.lane.b32.xlu0 %v1424, 104
        %v1625 = vpop.permute.xlu0 %1624
        %1626 = vrot.lane.b32.xlu0 %v1425, 104
        %v1627 = vpop.permute.xlu0 %1626
        %1628 = vrot.lane.b32.xlu0 %v1426, 104
        %v1629 = vpop.permute.xlu0 %1628
        %1630 = vrot.lane.b32.xlu0 %v1427, 104
        %v1631 = vpop.permute.xlu0 %1630
        %1632 = vrot.lane.b32.xlu0 %v1428, 104
        %v1633 = vpop.permute.xlu0 %1632
        %1634 = vrot.lane.b32.xlu0 %v1429, 104
        %v1635 = vpop.permute.xlu0 %1634
        %1636 = vrot.lane.b32.xlu0 %v1430, 104
        %v1637 = vpop.permute.xlu0 %1636
        %1638 = vrot.lane.b32.xlu0 %v1431, 104
        %v1639 = vpop.permute.xlu0 %1638
        %1640 = vrot.lane.b32.xlu0 %v1432, 104
        %v1641 = vpop.permute.xlu0 %1640
        %1658 = vmatprep.subr.mxu0 0.0
        %1659 = vmatpush1.msra.mxu0 %v1641
        %1660 = vmatprep.subr.mxu0 0.0
        %1661 = vmatpush1.msra.mxu0 %v1639
        %1662 = vmatprep.subr.mxu0 0.0
        %1663 = vmatpush1.msra.mxu0 %v1637
        %1664 = vmatprep.subr.mxu0 0.0
        %1665 = vmatpush1.msra.mxu0 %v1635
        %1666 = vmatprep.subr.mxu0 0.0
        %1667 = vmatpush1.msra.mxu0 %v1633
        %1668 = vmatprep.subr.mxu0 0.0
        %1669 = vmatpush1.msra.mxu0 %v1631
        %1670 = vmatprep.subr.mxu0 0.0
        %1671 = vmatpush1.msra.mxu0 %v1629
        %1672 = vmatprep.subr.mxu0 0.0
        %1673 = vmatpush1.msra.mxu0 %v1627
        %1674 = vmatprep.subr.mxu0 0.0
        %1675 = vmatpush1.msra.mxu0 %v1625
        %1676 = vmatprep.subr.mxu0 0.0
        %1677 = vmatpush1.msra.mxu0 %v1623
        %1678 = vmatprep.subr.mxu0 0.0
        %1679 = vmatpush1.msra.mxu0 %v1621
        %1680 = vmatprep.subr.mxu0 0.0
        %1681 = vmatpush1.msra.mxu0 %v1619
        %1682 = vmatprep.subr.mxu0 0.0
        %1683 = vmatpush1.msra.mxu0 %v1617
        %1684 = vmatprep.subr.mxu0 0.0
        %1685 = vmatpush1.msra.mxu0 %v1615
        %1686 = vmatprep.subr.mxu0 0.0
        %1687 = vmatpush1.msra.mxu0 %v1613
        %1688 = vmatprep.subr.mxu0 0.0
        %1689 = vmatpush1.msra.mxu0 %v1611
        %1690 = vmatprep.subr.mxu0 0.0
        %1691 = vmatpush2.msra.mxu0 0.0
        %1692 = vmatprep.subr.mxu0 0.0
        %1693 = vmatpush2.msra.mxu0 0.0
        %1694 = vmatprep.subr.mxu0 0.0
        %1695 = vmatpush2.msra.mxu0 0.0
        %1696 = vmatprep.subr.mxu0 0.0
        %1697 = vmatpush2.msra.mxu0 0.0
        %1698 = vmatprep.subr.mxu0 0.0
        %1699 = vmatpush2.msra.mxu0 0.0
        %1700 = vmatprep.subr.mxu0 0.0
        %1701 = vmatpush2.msra.mxu0 0.0
        %1702 = vmatprep.subr.mxu0 0.0
        %1703 = vmatpush2.msra.mxu0 0.0
        %1704 = vmatprep.subr.mxu0 0.0
        %1705 = vmatpush2.msra.mxu0 0.0
        %1706 = vmatprep.subr.mxu0 0.0
        %1707 = vmatpush2.msra.mxu0 0.0
        %1708 = vmatprep.subr.mxu0 0.0
        %1709 = vmatpush2.msra.mxu0 0.0
        %1710 = vmatprep.subr.mxu0 0.0
        %1711 = vmatpush2.msra.mxu0 0.0
        %1712 = vmatprep.subr.mxu0 0.0
        %1713 = vmatpush2.msra.mxu0 0.0
        %1714 = vmatprep.subr.mxu0 0.0
        %1715 = vmatpush2.msra.mxu0 0.0
        %1716 = vmatprep.subr.mxu0 0.0
        %1717 = vmatpush2.msra.mxu0 0.0
        %1718 = vmatprep.subr.mxu0 0.0
        %1719 = vmatpush2.msra.mxu0 0.0
        %1720 = vmatprep.subr.mxu0 0.0
        %1721 = vmatpush2.msra.mxu0 0.0
        %1722 = vmatprep.mubr.f32.mxu0 0.0
        %1723 = vmatmul.mubr.f32.gmra.mxu0 %v1591
        %v1724 = vpop.f32.mrf.mxu0
        %v1725 = vadd.f32 0.0, %v1724
        %v1726 = vpop.f32.mrf.mxu0
        %1727 = vdwg.mxu0
        %v1728 = vrcp.pop %v1593
        %v1729 = vmul.f32 %v1725, %v1728
        %1731 = vrot.lane.b32.xlu0 %v1071, 8
        %v1732 = vpop.permute.xlu0 %1731
        %1735 = vrot.lane.b32.xlu0 %v1400, 16
        %v1736 = vpop.permute.xlu0 %1735
        %1739 = vrot.lane.b32.xlu0 %v1729, 24
        %v1740 = vpop.permute.xlu0 %1739
        %v1742 = vsel %vm542, %v742, %v1732
        %vm1743 = vcmask 130048
        %v1744 = vsel %vm1743, %v1742, %v1736
        %vm1745 = vcmask 195584
        %v1746 = vsel %vm1745, %v1744, %v1740
        %v1748 = vlaneseq
        %v1749 = vshrl.u32 %v1748, 7
        %v1750 = vsub.s32 0, %v1749
        %v1751 = vrot.slane %v433, %v1750
        %v1754 = vsel %vm434, %v1746, 0
        %1756 = vmatprep.subr.mxu0 0.0
        %1757 = vmatpush1.msra.mxu0 0.0
        %1758 = vmatprep.subr.mxu0 0.0
        %1759 = vmatpush1.msra.mxu0 0.0
        %1760 = vmatprep.subr.mxu0 0.0
        %1761 = vmatpush1.msra.mxu0 0.0
        %1762 = vmatprep.subr.mxu0 0.0
        %1763 = vmatpush1.msra.mxu0 0.0
        %1764 = vmatprep.subr.mxu0 0.0
        %1765 = vmatpush1.msra.mxu0 0.0
        %1766 = vmatprep.subr.mxu0 0.0
        %1767 = vmatpush1.msra.mxu0 0.0
        %1768 = vmatprep.subr.mxu0 0.0
        %1769 = vmatpush1.msra.mxu0 0.0
        %1770 = vmatprep.subr.mxu0 0.0
        %1771 = vmatpush1.msra.mxu0 0.0
        %1772 = vmatprep.subr.mxu0 0.0
        %1773 = vmatpush1.msra.mxu0 0.0
        %1774 = vmatprep.subr.mxu0 0.0
        %1775 = vmatpush1.msra.mxu0 0.0
        %1776 = vmatprep.subr.mxu0 0.0
        %1777 = vmatpush1.msra.mxu0 0.0
        %1778 = vmatprep.subr.mxu0 0.0
        %1779 = vmatpush1.msra.mxu0 0.0
        %1780 = vmatprep.subr.mxu0 0.0
        %1781 = vmatpush1.msra.mxu0 %v432
        %1782 = vmatprep.subr.mxu0 0.0
        %1783 = vmatpush1.msra.mxu0 %v431
        %1784 = vmatprep.subr.mxu0 0.0
        %1785 = vmatpush1.msra.mxu0 %v430
        %1786 = vmatprep.subr.mxu0 0.0
        %1787 = vmatpush1.msra.mxu0 %v429
        %1788 = vmatprep.subr.mxu0 0.0
        %1789 = vmatpush2.msra.mxu0 0.0
        %1790 = vmatprep.subr.mxu0 0.0
        %1791 = vmatpush2.msra.mxu0 0.0
        %1792 = vmatprep.subr.mxu0 0.0
        %1793 = vmatpush2.msra.mxu0 0.0
        %1794 = vmatprep.subr.mxu0 0.0
        %1795 = vmatpush2.msra.mxu0 0.0
        %1796 = vmatprep.subr.mxu0 0.0
        %1797 = vmatpush2.msra.mxu0 0.0
        %1798 = vmatprep.subr.mxu0 0.0
        %1799 = vmatpush2.msra.mxu0 0.0
        %1800 = vmatprep.subr.mxu0 0.0
        %1801 = vmatpush2.msra.mxu0 0.0
        %1802 = vmatprep.subr.mxu0 0.0
        %1803 = vmatpush2.msra.mxu0 0.0
        %1804 = vmatprep.subr.mxu0 0.0
        %1805 = vmatpush2.msra.mxu0 0.0
        %1806 = vmatprep.subr.mxu0 0.0
        %1807 = vmatpush2.msra.mxu0 0.0
        %1808 = vmatprep.subr.mxu0 0.0
        %1809 = vmatpush2.msra.mxu0 0.0
        %1810 = vmatprep.subr.mxu0 0.0
        %1811 = vmatpush2.msra.mxu0 0.0
        %1812 = vmatprep.subr.mxu0 0.0
        %1813 = vmatpush2.msra.mxu0 0.0
        %1814 = vmatprep.subr.mxu0 0.0
        %1815 = vmatpush2.msra.mxu0 0.0
        %1816 = vmatprep.subr.mxu0 0.0
        %1817 = vmatpush2.msra.mxu0 0.0
        %1818 = vmatprep.subr.mxu0 0.0
        %1819 = vmatpush2.msra.mxu0 0.0
        %1820 = vmatprep.mubr.f32.mxu0 0.0
        %1821 = vmatmul.mubr.f32.gmra.mxu0 %v1754
        %v1822 = vpop.f32.mrf.mxu0
        %v1823 = vadd.f32 %v1751, %v1822
        %v1824 = vpop.f32.mrf.mxu0
        %1825 = vdwg.mxu0
        %v1826 = vld [vmem:[%s417] sm:$0xff]
        %v1827 = vld [vmem:[%s417 + $0x8] sm:$0xff]
        %v1828 = vld [vmem:[%s417 + $0x10] sm:$0xff]
        %v1829 = vld [vmem:[%s417 + $0x18] sm:$0xff]
        %v1830 = vld [vmem:[%s417 + $0x20] sm:$0xff]
        %v1831 = vld [vmem:[%s417 + $0x28] sm:$0xff]
        %v1832 = vld [vmem:[%s417 + $0x30] sm:$0xff]
        %v1833 = vld [vmem:[%s417 + $0x38] sm:$0xff]
        %v1834 = vld [vmem:[%s417 + $0x40] sm:$0xff]
        %v1835 = vld [vmem:[%s417 + $0x48] sm:$0xff]
        %v1836 = vld [vmem:[%s417 + $0x50] sm:$0xff]
        %v1837 = vld [vmem:[%s417 + $0x58] sm:$0xff]
        %v1838 = vld [vmem:[%s417 + $0x60] sm:$0xff]
        %v1839 = vld [vmem:[%s417 + $0x68] sm:$0xff]
        %v1840 = vld [vmem:[%s417 + $0x70] sm:$0xff]
        %v1841 = vld [vmem:[%s417 + $0x78] sm:$0xff]
        %v1843 = vsel %vm434, %v1823, 0
        %v1846 = vsel %vm434, %v1826, 0
        %v1849 = vsel %vm434, %v1827, 0
        %v1852 = vsel %vm434, %v1828, 0
        %v1855 = vsel %vm434, %v1829, 0
        %v1858 = vsel %vm434, %v1830, 0
        %v1861 = vsel %vm434, %v1831, 0
        %v1864 = vsel %vm434, %v1832, 0
        %v1867 = vsel %vm434, %v1833, 0
        %v1870 = vsel %vm434, %v1834, 0
        %v1873 = vsel %vm434, %v1835, 0
        %v1876 = vsel %vm434, %v1836, 0
        %v1879 = vsel %vm434, %v1837, 0
        %v1882 = vsel %vm434, %v1838, 0
        %v1885 = vsel %vm434, %v1839, 0
        %v1888 = vsel %vm434, %v1840, 0
        %v1891 = vsel %vm434, %v1841, 0
        %1893 = vmatprep.subr.mxu0 0.0
        %1894 = vmatpush1.xpose.msra.mxu0 %v1891
        %1895 = vmatprep.subr.mxu0 0.0
        %1896 = vmatpush1.xpose.msra.mxu0 %v1888
        %1897 = vmatprep.subr.mxu0 0.0
        %1898 = vmatpush1.xpose.msra.mxu0 %v1885
        %1899 = vmatprep.subr.mxu0 0.0
        %1900 = vmatpush1.xpose.msra.mxu0 %v1882
        %1901 = vmatprep.subr.mxu0 0.0
        %1902 = vmatpush1.xpose.msra.mxu0 %v1879
        %1903 = vmatprep.subr.mxu0 0.0
        %1904 = vmatpush1.xpose.msra.mxu0 %v1876
        %1905 = vmatprep.subr.mxu0 0.0
        %1906 = vmatpush1.xpose.msra.mxu0 %v1873
        %1907 = vmatprep.subr.mxu0 0.0
        %1908 = vmatpush1.xpose.msra.mxu0 %v1870
        %1909 = vmatprep.subr.mxu0 0.0
        %1910 = vmatpush1.xpose.msra.mxu0 %v1867
        %1911 = vmatprep.subr.mxu0 0.0
        %1912 = vmatpush1.xpose.msra.mxu0 %v1864
        %1913 = vmatprep.subr.mxu0 0.0
        %1914 = vmatpush1.xpose.msra.mxu0 %v1861
        %1915 = vmatprep.subr.mxu0 0.0
        %1916 = vmatpush1.xpose.msra.mxu0 %v1858
        %1917 = vmatprep.subr.mxu0 0.0
        %1918 = vmatpush1.xpose.msra.mxu0 %v1855
        %1919 = vmatprep.subr.mxu0 0.0
        %1920 = vmatpush1.xpose.msra.mxu0 %v1852
        %1921 = vmatprep.subr.mxu0 0.0
        %1922 = vmatpush1.xpose.msra.mxu0 %v1849
        %1923 = vmatprep.subr.mxu0 0.0
        %1924 = vmatpush1.xpose.msra.mxu0 %v1846
        %1925 = vmatprep.subr.mxu0 0.0
        %1926 = vmatpush2.xpose.msra.mxu0 0.0
        %1927 = vmatprep.subr.mxu0 0.0
        %1928 = vmatpush2.xpose.msra.mxu0 0.0
        %1929 = vmatprep.subr.mxu0 0.0
        %1930 = vmatpush2.xpose.msra.mxu0 0.0
        %1931 = vmatprep.subr.mxu0 0.0
        %1932 = vmatpush2.xpose.msra.mxu0 0.0
        %1933 = vmatprep.subr.mxu0 0.0
        %1934 = vmatpush2.xpose.msra.mxu0 0.0
        %1935 = vmatprep.subr.mxu0 0.0
        %1936 = vmatpush2.xpose.msra.mxu0 0.0
        %1937 = vmatprep.subr.mxu0 0.0
        %1938 = vmatpush2.xpose.msra.mxu0 0.0
        %1939 = vmatprep.subr.mxu0 0.0
        %1940 = vmatpush2.xpose.msra.mxu0 0.0
        %1941 = vmatprep.subr.mxu0 0.0
        %1942 = vmatpush2.xpose.msra.mxu0 0.0
        %1943 = vmatprep.subr.mxu0 0.0
        %1944 = vmatpush2.xpose.msra.mxu0 0.0
        %1945 = vmatprep.subr.mxu0 0.0
        %1946 = vmatpush2.xpose.msra.mxu0 0.0
        %1947 = vmatprep.subr.mxu0 0.0
        %1948 = vmatpush2.xpose.msra.mxu0 0.0
        %1949 = vmatprep.subr.mxu0 0.0
        %1950 = vmatpush2.xpose.msra.mxu0 0.0
        %1951 = vmatprep.subr.mxu0 0.0
        %1952 = vmatpush2.xpose.msra.mxu0 0.0
        %1953 = vmatprep.subr.mxu0 0.0
        %1954 = vmatpush2.xpose.msra.mxu0 0.0
        %1955 = vmatprep.subr.mxu0 0.0
        %1956 = vmatpush2.xpose.msra.mxu0 0.0
        %1957 = vmatprep.mubr.f32.mxu0 0.0
        %1958 = vmatmul.mubr.f32.gmra.mxu0 %v1843
        %v1959 = vpop.f32.mrf.mxu0
        %v1960 = vadd.f32 0.0, %v1959
        %v1961 = vpop.f32.mrf.mxu0
        %1962 = vdwg.mxu0
        %v1963 = vmul.f32 %v1960, 0.17677669
        %v1964 = vtanh.pop %v1963
        %v1965 = vmul.f32 %v1964, 10.0
        %v1966 = vadd.f32 %v1965, %v424
        %1967 = vmax.xlane.f32.xlu0 %v1966
        %v1968 = vpop.xlane.xlu0 %1967
        %v1969 = vsub.f32 %v1966, %v1968
        %v1970 = vmul.f32 %v1969, 1.442695
        %v1971 = vpow.pop %v1970
        %1972 = vadd.xlane.f32.xlu0 %v1971
        %v1973 = vpop.xlane.xlu0 %1972
        %v1974 = vrcp.pop %v1973
        %v1975 = vmul.f32 %v1971, %v1974
        %1976 = vst [vmem:[%s394] sm:$0xff] %v1975
        %s1977 = sand.u32 %s250, 1
        %s1978 = scalar_lea.sflag [#allocation3], %s1977
        %s1979 = sand.u32 %s250, 1
        %s1980 = smul.addr %s1979, 8
        %s1981 = scalar_lea.vmem [#allocation2], %s1980
        // Predicated region
        $region57: #{tpu_custom_call.1} parent=55 // pred_check
          %p1982 = pneg %p260
        $region58: #{tpu_custom_call.1} parent=55 // pred_check_branch
          %1984 = sbr.rel (%p1982) target = $region60
        $region59: #{tpu_custom_call.1} parent=55 // pred_region
          %s1986 = ssub.s32 128, 128
          %1987 = vsyncadd %s1978, %s1986
          %s1988 = smul.addr %s23, 128
          %s1989 = scalar_lea.hbm %s9, %s1988
          %s1991 = sshll.u32 %s1981, 4
          %s1992 = int_to_ptr.vmem [resolvable:$true] %s1991
          %1994 = dma.vmem_to_hbm [thread:$0]  %s1992, 128, %s1989, %s1978
        $region60: #{tpu_custom_call.1} parent=55 // pred_fallthru
          _
      $region56: #{tpu_custom_call.1} parent=5 // pred_fallthru
        _
      %p1995 = scmp.le.s32.totalorder 2, %s18
      // Predicated region
      $region61: #{tpu_custom_call.1} parent=5 // pred_check
        %p1996 = pneg %p1995
      $region62: #{tpu_custom_call.1} parent=5 // pred_check_branch
        %1998 = sbr.rel (%p1996) target = $region64
      $region63: #{tpu_custom_call.1} parent=5 // pred_region
        %s1999 = ssub.s32 %s18, 2
        // Predicated region
        $region65: #{tpu_custom_call.1} parent=63 // pred_check
          %p2000 = pneg %p266
        $region66: #{tpu_custom_call.1} parent=63 // pred_check_branch
          %2002 = sbr.rel (%p2000) target = $region68
        $region67: #{tpu_custom_call.1} parent=63 // pred_region
          %s2003 = sand.u32 %s251, 1
          %s2004 = scalar_lea.sflag [#allocation3], %s2003
          %s2005 = sand.u32 %s251, 1
          %s2006 = smul.addr %s2005, 8
          %s2007 = scalar_lea.vmem [#allocation2], %s2006
          %2008 = dma.done %s2004, 128
        $region68: #{tpu_custom_call.1} parent=63 // pred_fallthru
          _
      $region64: #{tpu_custom_call.1} parent=5 // pred_fallthru
        _
    $region6: #{tpu_custom_call.1} parent=1 // loop_footer
      %s22 = sadd.s32 1, %s18
    $region7: #{tpu_custom_call.1} parent=1 // loop_footer_branch
      %17 = sbr.rel target = $region3
    $region8: #{tpu_custom_call.1} parent=1 // loop_exit
      _
    %2009 = vsyncpa [#allocation3], 1
    %s2010 = scalar_lea.sflag [#allocation3], 1
    %2011 = vsyncpa %s2010, 1

</llo_original>
